<compile_context>
chip_gen: v7x
topology: tpu7x:2x2x1
jax: 0.10.0
libtpu: 0.0.40
codegen_flags: <defaults>
</compile_context>

<pallas_src>
import functools

import jax
import jax.numpy as jnp
from jax.experimental import pallas as pl
from jax.experimental.pallas import tpu as pltpu


def dwconv_kernel(x_ref, w_ref, b_ref, lm_ref, rm_ref, o_ref, *, H, W, compute_dtype):
    """3x3 depthwise conv (stride 1, pad 1, bias) on one (H*W, TC) channel tile."""
    HW = H * W
    x_in = x_ref[...]                               # (HW, TC), input dtype
    x = x_in.astype(compute_dtype)
    w = w_ref[...].astype(compute_dtype)            # (9, TC): row ky*3+kx = torch weight[:,0,ky,kx]
    b = b_ref[...].astype(compute_dtype)            # (1, TC)
    left_ok = lm_ref[...]                           # (HW, 1), already in compute dtype
    right_ok = rm_ref[...]                          # (HW, 1)

    # dx = -1 / 0 / +1 shifted copies of the input: XLU rotate along the flat
    # token axis + precomputed W-border masks (replaces zero-padding copies).
    # TODO(synk): roll directly in bf16 once packed-sublane rotate is confirmed
    # on the target compiler; the f32 view costs one up/downcast pass.
    x32 = x_in.astype(jnp.float32)
    t_m1 = pltpu.roll(x32, shift=1, axis=0).astype(compute_dtype) * left_ok        # t_m1[n] = x[n-1]
    t_p1 = pltpu.roll(x32, shift=HW - 1, axis=0).astype(compute_dtype) * right_ok  # t_p1[n] = x[n+1]

    # Fold the 3 taps of each kernel row before the +-W shift
    # (3 shifts instead of 8, ~15 VPU tap ops/element instead of 27).
    rows = []
    for ky in range(3):                              # static unroll over kernel rows
        rows.append(t_m1 * w[3 * ky + 0:3 * ky + 1]
                    + x * w[3 * ky + 1:3 * ky + 2]
                    + t_p1 * w[3 * ky + 2:3 * ky + 3])

    # dy = 0 row contributes in place.
    acc = rows[1]
    if H > 1:
        # dy = +-1 rows: +-W shift with zero fill expressed as a sublane-aligned
        # (W % 8 == 0) concatenate with a (W, TC) zero strip.  This replaces the
        # full-slab top/bot mask multiplies (2 fewer VPU ops/element).
        zrow = jnp.zeros((W, x.shape[1]), compute_dtype)
        acc = acc + jnp.concatenate([zrow, rows[0][:HW - W, :]], axis=0)   # from row above
        acc = acc + jnp.concatenate([rows[2][W:, :], zrow], axis=0)        # from row below

    o_ref[...] = (acc + b).astype(o_ref.dtype)


def _vmem_capacity_bytes():
    """Physical per-TensorCore VMEM (64 MiB on v7x, 128 MiB on v5e/v6e)."""
    try:
        return int(pltpu.get_tpu_info().vmem_capacity_bytes)
    except Exception:
        return 64 * 1024 * 1024      # conservative lower bound across generations


def _pick_channel_tile(N, C, io_itemsize, vmem_cap):
    """Largest channel tile (multiple of 128, dividing C) whose working set fits VMEM."""
    if C % 128 != 0:
        return C                      # full-dim fallback: correct, but masked partial stores
    budget = vmem_cap // 2            # headroom for the pipeline / scheduler
    best, tc = 128, 128
    while tc <= C:
        if C % tc == 0:
            need = (4 * N * tc * io_itemsize      # double-buffered in + out blocks
                    + 12 * N * tc * 4             # live f32-equivalent kernel temporaries
                    + 2 * N * 128 * 4)            # lane-padded (N,1) border masks
            if need <= budget:
                best = tc
        tc += 128
    return best


def dwconv(x, w9, b, H, W, *, channel_tile=None):
    """x: (B, H*W, C); w9: (9, C) with row ky*3+kx = torch weight[:, 0, ky, kx]; b: (1, C)."""
    B, N, C = x.shape
    assert N == H * W, "token count must equal H*W"
    # bf16 VALU math only where it is safe/beneficial: bf16 input and W aligned
    # to the packed-sublane tile (16).  Otherwise compute in f32 (v5e has no
    # bf16 VALU; bf16 I/O alone still halves HBM traffic there).
    if x.dtype == jnp.bfloat16 and W % 16 == 0:
        cdt = jnp.bfloat16
    else:
        cdt = jnp.float32

    vmem_cap = _vmem_capacity_bytes()
    if channel_tile is None:
        tc = _pick_channel_tile(N, C, x.dtype.itemsize, vmem_cap)
    else:
        assert C % channel_tile == 0, "channel_tile must divide C"
        tc = channel_tile

    # W-direction border masks, hoisted out of the kernel (no per-step iota /
    # integer divide once the grid has B * C/tc steps).
    xpos = jnp.arange(N, dtype=jnp.int32) % W
    lmask = (xpos >= 1).astype(cdt).reshape(N, 1)        # source column x-1 exists
    rmask = (xpos <= W - 2).astype(cdt).reshape(N, 1)    # source column x+1 exists

    vmem_limit = int(min(vmem_cap - (4 << 20), 100 << 20))
    vmem_limit = max(vmem_limit, 32 << 20)

    return pl.pallas_call(
        functools.partial(dwconv_kernel, H=H, W=W, compute_dtype=cdt),
        out_shape=jax.ShapeDtypeStruct((B, N, C), x.dtype),
        grid=(B, C // tc),
        in_specs=[
            pl.BlockSpec((None, N, tc), lambda bb, cc: (bb, 0, cc)),   # per-(batch, C-tile) token slab
            pl.BlockSpec((9, tc), lambda bb, cc: (0, cc)),             # depthwise weights
            pl.BlockSpec((1, tc), lambda bb, cc: (0, cc)),             # bias
            pl.BlockSpec((N, 1), lambda bb, cc: (0, 0)),               # left-border mask (constant block)
            pl.BlockSpec((N, 1), lambda bb, cc: (0, 0)),               # right-border mask (constant block)
        ],
        out_specs=pl.BlockSpec((None, N, tc), lambda bb, cc: (bb, 0, cc)),
        compiler_params=pltpu.CompilerParams(
            dimension_semantics=("parallel", "parallel"),
            vmem_limit_bytes=vmem_limit,
        ),
    )(x, w9, b, lmask, rmask)


def dwconv_ref(x, w9, b, H, W):
    """Pure-JAX reference (lax depthwise conv) for correctness checking."""
    B, N, C = x.shape
    img = x.reshape(B, H, W, C)
    k = w9.reshape(3, 3, 1, C)                     # HWIO depthwise kernel
    out = jax.lax.conv_general_dilated(
        img, k, window_strides=(1, 1), padding="SAME",
        dimension_numbers=("NHWC", "HWIO", "NHWC"),
        feature_group_count=C)
    return (out + b.reshape(1, 1, 1, C)).reshape(B, N, C)


if __name__ == "__main__":
    B, H, W, C = 2, 16, 16, 256      # small, but lane/sublane aligned (W % 8 == 0, C % 128 == 0)
    N = H * W

    key = jax.random.PRNGKey(0)
    kx, kw, kb = jax.random.split(key, 3)
    x = jax.random.normal(kx, (B, N, C), jnp.float32)
    # weights stored pre-flattened as (9, C): row ky*3+kx holds torch weight[:, 0, ky, kx]
    w9 = jax.random.normal(kw, (9, C), jnp.float32) * (2.0 / 9.0) ** 0.5
    b = jax.random.normal(kb, (1, C), jnp.float32) * 0.02

    # f32 path; force channel_tile=128 so the demo exercises the C-tiling grid (2, 2).
    out = jax.block_until_ready(dwconv(x, w9, b, H, W, channel_tile=128))
    ref = jax.block_until_ready(dwconv_ref(x, w9, b, H, W))
    assert out.shape == (B, N, C)
    assert bool(jnp.all(jnp.isfinite(out)))
    err = float(jnp.max(jnp.abs(out - ref)))
    assert err < 1e-4, f"f32 max abs error vs reference: {err}"

    # bf16 path (bf16 I/O + bf16 tap math for v6e/v7x); auto channel tile.
    xb = x.astype(jnp.bfloat16)
    out_b = jax.block_until_ready(dwconv(xb, w9, b, H, W))
    ref_b = dwconv_ref(xb.astype(jnp.float32), w9, b, H, W)
    assert out_b.shape == (B, N, C) and out_b.dtype == jnp.bfloat16
    out_b32 = out_b.astype(jnp.float32)
    assert bool(jnp.all(jnp.isfinite(out_b32)))
    err_b = float(jnp.max(jnp.abs(out_b32 - ref_b)))
    assert err_b < 0.5, f"bf16 max abs error vs reference: {err_b}"

    print("KERNEL_OK")
</pallas_src>

<mosaic_0001>
module attributes {stable_mosaic.version = 11 : i64} {
  func.func @dwconv_kernel(%arg0: i32, %arg1: i32, %arg2: memref<1x256x128xf32, #tpu.memory_space<vmem>>, %arg3: memref<9x128xf32, #tpu.memory_space<vmem>>, %arg4: memref<1x128xf32, #tpu.memory_space<vmem>>, %arg5: memref<256x1xf32, #tpu.memory_space<vmem>>, %arg6: memref<256x1xf32, #tpu.memory_space<vmem>>, %arg7: memref<1x256x128xf32, #tpu.memory_space<vmem>>) attributes {dimension_semantics = [#tpu.dimension_semantics<parallel>, #tpu.dimension_semantics<parallel>], iteration_bounds = array<i64: 2, 2>, scalar_prefetch = 0 : i64, scratch_operands = 0 : i64, tpu.core_type = #tpu.core_type<tc>, window_params = [{transform_indices = @transform_0, window_bounds = array<i64: 1, 256, 128>}, {transform_indices = @transform_1, window_bounds = array<i64: 9, 128>}, {transform_indices = @transform_2, window_bounds = array<i64: 1, 128>}, {pipeline_mode = #tpu.pipeline_mode<synchronous>, transform_indices = @transform_3, window_bounds = array<i64: 256, 1>}, {pipeline_mode = #tpu.pipeline_mode<synchronous>, transform_indices = @transform_4, window_bounds = array<i64: 256, 1>}, {transform_indices = @transform_5, window_bounds = array<i64: 1, 256, 128>}]} {
    %c0 = arith.constant 0 : index
    %c0_0 = arith.constant 0 : index
    %c0_1 = arith.constant 0 : index
    %0 = vector.load %arg2[%c0, %c0_0, %c0_1] : memref<1x256x128xf32, #tpu.memory_space<vmem>>, vector<1x256x128xf32>
    %1 = vector.shape_cast %0 : vector<1x256x128xf32> to vector<256x128xf32>
    %c0_2 = arith.constant 0 : index
    %c0_3 = arith.constant 0 : index
    %2 = vector.load %arg3[%c0_2, %c0_3] : memref<9x128xf32, #tpu.memory_space<vmem>>, vector<9x128xf32>
    %c0_4 = arith.constant 0 : index
    %c0_5 = arith.constant 0 : index
    %3 = vector.load %arg4[%c0_4, %c0_5] : memref<1x128xf32, #tpu.memory_space<vmem>>, vector<1x128xf32>
    %c0_6 = arith.constant 0 : index
    %c0_7 = arith.constant 0 : index
    %4 = vector.load %arg5[%c0_6, %c0_7] : memref<256x1xf32, #tpu.memory_space<vmem>>, vector<256x1xf32>
    %c0_8 = arith.constant 0 : index
    %c0_9 = arith.constant 0 : index
    %5 = vector.load %arg6[%c0_8, %c0_9] : memref<256x1xf32, #tpu.memory_space<vmem>>, vector<256x1xf32>
    %c1_i32 = arith.constant 1 : i32
    %6 = tpu.dynamic_rotate %1 by %c1_i32 dim 0 : vector<256x128xf32>, i32 -> vector<256x128xf32>
    %7 = vector.broadcast %4 : vector<256x1xf32> to vector<256x128xf32>
    %8 = arith.mulf %6, %7 : vector<256x128xf32>
    %c255_i32 = arith.constant 255 : i32
    %9 = tpu.dynamic_rotate %1 by %c255_i32 dim 0 : vector<256x128xf32>, i32 -> vector<256x128xf32>
    %10 = vector.broadcast %5 : vector<256x1xf32> to vector<256x128xf32>
    %11 = arith.mulf %9, %10 : vector<256x128xf32>
    %12 = vector.extract_strided_slice %2 {offsets = [0, 0], sizes = [1, 128], strides = [1, 1]} : vector<9x128xf32> to vector<1x128xf32>
    %13 = vector.broadcast %12 : vector<1x128xf32> to vector<256x128xf32>
    %14 = arith.mulf %8, %13 : vector<256x128xf32>
    %15 = vector.extract_strided_slice %2 {offsets = [1, 0], sizes = [1, 128], strides = [1, 1]} : vector<9x128xf32> to vector<1x128xf32>
    %16 = vector.broadcast %15 : vector<1x128xf32> to vector<256x128xf32>
    %17 = arith.mulf %1, %16 : vector<256x128xf32>
    %18 = arith.addf %14, %17 : vector<256x128xf32>
    %19 = vector.extract_strided_slice %2 {offsets = [2, 0], sizes = [1, 128], strides = [1, 1]} : vector<9x128xf32> to vector<1x128xf32>
    %20 = vector.broadcast %19 : vector<1x128xf32> to vector<256x128xf32>
    %21 = arith.mulf %11, %20 : vector<256x128xf32>
    %22 = arith.addf %18, %21 : vector<256x128xf32>
    %23 = vector.extract_strided_slice %2 {offsets = [3, 0], sizes = [1, 128], strides = [1, 1]} : vector<9x128xf32> to vector<1x128xf32>
    %24 = vector.broadcast %23 : vector<1x128xf32> to vector<256x128xf32>
    %25 = arith.mulf %8, %24 : vector<256x128xf32>
    %26 = vector.extract_strided_slice %2 {offsets = [4, 0], sizes = [1, 128], strides = [1, 1]} : vector<9x128xf32> to vector<1x128xf32>
    %27 = vector.broadcast %26 : vector<1x128xf32> to vector<256x128xf32>
    %28 = arith.mulf %1, %27 : vector<256x128xf32>
    %29 = arith.addf %25, %28 : vector<256x128xf32>
    %30 = vector.extract_strided_slice %2 {offsets = [5, 0], sizes = [1, 128], strides = [1, 1]} : vector<9x128xf32> to vector<1x128xf32>
    %31 = vector.broadcast %30 : vector<1x128xf32> to vector<256x128xf32>
    %32 = arith.mulf %11, %31 : vector<256x128xf32>
    %33 = arith.addf %29, %32 : vector<256x128xf32>
    %34 = vector.extract_strided_slice %2 {offsets = [6, 0], sizes = [1, 128], strides = [1, 1]} : vector<9x128xf32> to vector<1x128xf32>
    %35 = vector.broadcast %34 : vector<1x128xf32> to vector<256x128xf32>
    %36 = arith.mulf %8, %35 : vector<256x128xf32>
    %37 = vector.extract_strided_slice %2 {offsets = [7, 0], sizes = [1, 128], strides = [1, 1]} : vector<9x128xf32> to vector<1x128xf32>
    %38 = vector.broadcast %37 : vector<1x128xf32> to vector<256x128xf32>
    %39 = arith.mulf %1, %38 : vector<256x128xf32>
    %40 = arith.addf %36, %39 : vector<256x128xf32>
    %41 = vector.extract_strided_slice %2 {offsets = [8, 0], sizes = [1, 128], strides = [1, 1]} : vector<9x128xf32> to vector<1x128xf32>
    %42 = vector.broadcast %41 : vector<1x128xf32> to vector<256x128xf32>
    %43 = arith.mulf %11, %42 : vector<256x128xf32>
    %44 = arith.addf %40, %43 : vector<256x128xf32>
    %cst = arith.constant 0.000000e+00 : f32
    %45 = vector.broadcast %cst : f32 to vector<16x128xf32>
    %46 = vector.extract_strided_slice %22 {offsets = [0, 0], sizes = [240, 128], strides = [1, 1]} : vector<256x128xf32> to vector<240x128xf32>
    %47 = tpu.concatenate %45, %46 in 0 : vector<16x128xf32>, vector<240x128xf32> -> vector<256x128xf32>
    %48 = arith.addf %33, %47 : vector<256x128xf32>
    %49 = vector.extract_strided_slice %44 {offsets = [16, 0], sizes = [240, 128], strides = [1, 1]} : vector<256x128xf32> to vector<240x128xf32>
    %50 = tpu.concatenate %49, %45 in 0 : vector<240x128xf32>, vector<16x128xf32> -> vector<256x128xf32>
    %51 = arith.addf %48, %50 : vector<256x128xf32>
    %52 = vector.broadcast %3 : vector<1x128xf32> to vector<256x128xf32>
    %53 = arith.addf %51, %52 : vector<256x128xf32>
    %c0_10 = arith.constant 0 : index
    %c0_11 = arith.constant 0 : index
    %c0_12 = arith.constant 0 : index
    %54 = vector.load %arg7[%c0_10, %c0_11, %c0_12] : memref<1x256x128xf32, #tpu.memory_space<vmem>>, vector<1x256x128xf32>
    %55 = vector.shape_cast %54 : vector<1x256x128xf32> to vector<256x128xf32>
    %56 = vector.shape_cast %53 : vector<256x128xf32> to vector<1x256x128xf32>
    tpu.vector_store %arg7[%c0_10, %c0_11, %c0_12], %56 {strides = array<i32>} : memref<1x256x128xf32, #tpu.memory_space<vmem>>, vector<1x256x128xf32>,
    return
  }
  func.func @transform_0(%arg0: i32, %arg1: i32) -> (i32, i32, i32) {
    %c0_i32 = arith.constant 0 : i32
    %c0_i32_0 = arith.constant 0 : i32
    return %arg0, %c0_i32, %arg1 : i32, i32, i32
  }
  func.func @transform_1(%arg0: i32, %arg1: i32) -> (i32, i32) {
    %c0_i32 = arith.constant 0 : i32
    %c0_i32_0 = arith.constant 0 : i32
    return %c0_i32, %arg1 : i32, i32
  }
  func.func @transform_2(%arg0: i32, %arg1: i32) -> (i32, i32) {
    %c0_i32 = arith.constant 0 : i32
    %c0_i32_0 = arith.constant 0 : i32
    return %c0_i32, %arg1 : i32, i32
  }
  func.func @transform_3(%arg0: i32, %arg1: i32) -> (i32, i32) {
    %c0_i32 = arith.constant 0 : i32
    %c0_i32_0 = arith.constant 0 : i32
    %c0_i32_1 = arith.constant 0 : i32
    return %c0_i32, %c0_i32_0 : i32, i32
  }
  func.func @transform_4(%arg0: i32, %arg1: i32) -> (i32, i32) {
    %c0_i32 = arith.constant 0 : i32
    %c0_i32_0 = arith.constant 0 : i32
    %c0_i32_1 = arith.constant 0 : i32
    return %c0_i32, %c0_i32_0 : i32, i32
  }
  func.func @transform_5(%arg0: i32, %arg1: i32) -> (i32, i32, i32) {
    %c0_i32 = arith.constant 0 : i32
    %c0_i32_0 = arith.constant 0 : i32
    return %arg0, %c0_i32, %arg1 : i32, i32, i32
  }
}

</mosaic_0001>

<llo_original>
// kernel: tpu_custom_call.1
$region0: #{tpu_custom_call.1}
  #allocation0 [shape = 'u32[]', space=smem, size = 0x4, offset = 0x4, fixed_abs, tag = 'smem constant byte address 0x4 - core index']
  #allocation1 [shape = 'u32[144,128]{1,0:T(1,128)}', space=vmem, size = 0x12000, scoped, tag = 'internal scratch']
  %s0 = inlined_call_operand.hbm [shape: f32[2,256,256], index: 0, kind: input, shape index: {}]
  %s1 = inlined_call_operand.vmem [shape: f32[9,256], index: 1, kind: input, shape index: {}]
  %s2 = inlined_call_operand.vmem [shape: f32[1,256], index: 2, kind: input, shape index: {}]
  %s3 = inlined_call_operand.vmem [shape: f32[256,1], index: 3, kind: input, shape index: {}]
  %s4 = inlined_call_operand.vmem [shape: f32[256,1], index: 4, kind: input, shape index: {}]
  %s5 = inlined_call_operand.hbm [shape: f32[2,256,256], index: 5, kind: output, shape index: {}]
  %s6 = sld [smem:[#allocation0]]
  $region95: #{tpu_custom_call.1} parent=0
    _
  %s8 = ssub.s32 1, %s6
  %s9 = scalar_select 0, %s8, %s6
  $region1: #{tpu_custom_call.1} parent=0
    #allocation2 [shape = 'u8[262144]{0}', space=vmem, size = 0x40000, scoped, tag = 'input window, operand 0']
    #allocation3 [shape = 's32[2]{0}', space=sflag, size = 0x8, scoped, tag = 'scoped memory for tpu_custom_call.1']
    #allocation4 [shape = 's32[2]{0}', space=sflag, size = 0x8, scoped, tag = 'scoped memory for tpu_custom_call.1']
    #allocation5 [shape = 'u8[16384]{0}', space=vmem, size = 0x4000, scoped, tag = 'input window, operand 1']
    #allocation6 [shape = 'u8[262144]{0}', space=vmem, size = 0x40000, scoped, tag = 'output window, operand 0']
    %10 = vsyncpa [#allocation3], 0
    %s11 = scalar_lea.sflag [#allocation3], 1
    %12 = vsyncpa %s11, 0
    %13 = vsyncpa [#allocation4], 0
    %s14 = scalar_lea.sflag [#allocation4], 1
    %15 = vsyncpa %s14, 0
    loop: start=0, step=1, limit=6
    $region2: #{tpu_custom_call.1} parent=1 // loop_pre_header
      _
    $region3: #{tpu_custom_call.1} parent=1 // loop_header
      %s17 = sphi 0, %s21
      %p18 = scmp.ge.s32.totalorder %s17, 6
      %s24 = sphi 0, %s36
      %s25 = sphi 0, %s32
      %s26 = sphi 0, %s24
      %s27 = sphi 0, %s25
      %s28 = sphi 0, %s26
      %s29 = sphi 0, %s27
      %s41 = sphi 0, %s43
      %s44 = sphi 0, %s41
      %s45 = sphi 0, %s44
      %s61 = sphi 0, %s45
      %s67 = sphi 0, %s69
      %s70 = sphi 0, %s67
      %s71 = sphi 0, %s70
      %s87 = sphi 0, %s71
      %s93 = sphi 0, %s95
      %s96 = sphi 0, %s93
      %s97 = sphi 0, %s96
      %s113 = sphi 0, %s97
      %s117 = sphi 0, %s117
      %s119 = sphi 0, %s117
      %s120 = sphi 0, %s119
      %s134 = sphi 0, %s120
      %s138 = sphi 0, %s138
      %s140 = sphi 0, %s138
      %s141 = sphi 0, %s140
      %s155 = sphi 0, %s141
      %s163 = sphi 0, %s165
      %s166 = sphi 0, %s163
      %s167 = sphi 0, %s166
      %s183 = sphi 0, %s167
    $region4: #{tpu_custom_call.1} parent=1 // loop_header_branch
      %20 = sbr.rel (%p18) target = $region8
    $region5: #{tpu_custom_call.1} parent=1 // loop_body
      %s22 = ssub.s32 %s17, 1
      %s23 = ssub.s32 %s17, 2
      %s30 = sadd.s32 1, %s25
      %p31 = scmp.ge.s32.totalorder %s30, 2
      %s32 = scalar_select %p31, 0, %s30
      %s33 = sadd.s32 1, %s24
      %s34 = scalar_select %p31, %s33, %s24
      %p35 = scmp.ge.s32.totalorder %s34, 2
      %s36 = scalar_select %p35, 0, %s34
      %s37 = ssub.s32 %s24, %s36
      %s38 = ssub.s32 %s25, %s32
      %s39 = sor.u32 %s37, %s38
      %p40 = scmp.eq.s32.totalorder %s39, 0
      %s42 = sadd.s32 %s41, 1
      %s43 = scalar_select %p40, %s41, %s42
      %p46 = pneg %p40
      %p47 = scmp.eq.s32.totalorder %s17, 3
      %p48 = por %p46, %p47
      %p49 = scmp.ne.s32.totalorder %s41, %s44
      %p50 = scmp.eq.s32.totalorder %s17, 0
      %p51 = por %p49, %p50
      %p52 = scmp.ne.s32.totalorder %s41, %s44
      %p53 = scmp.eq.s32.totalorder %s22, 3
      %p54 = por %p52, %p53
      %p55 = scmp.ne.s32.totalorder %s44, %s45
      %p56 = scmp.eq.s32.totalorder %s22, 0
      %p57 = por %p55, %p56
      %p58 = scmp.ne.s32.totalorder %s44, %s45
      %p59 = scmp.eq.s32.totalorder %s23, 3
      %p60 = por %p58, %p59
      %p62 = scmp.ne.s32.totalorder %s45, %s61
      %p63 = scmp.eq.s32.totalorder %s23, 0
      %p64 = por %p62, %p63
      %s65 = ssub.s32 %s25, %s32
      %p66 = scmp.eq.s32.totalorder %s65, 0
      %s68 = sadd.s32 %s67, 1
      %s69 = scalar_select %p66, %s67, %s68
      %p72 = pneg %p66
      %p73 = scmp.eq.s32.totalorder %s17, 3
      %p74 = por %p72, %p73
      %p75 = scmp.ne.s32.totalorder %s67, %s70
      %p76 = scmp.eq.s32.totalorder %s17, 0
      %p77 = por %p75, %p76
      %p78 = scmp.ne.s32.totalorder %s67, %s70
      %p79 = scmp.eq.s32.totalorder %s22, 3
      %p80 = por %p78, %p79
      %p81 = scmp.ne.s32.totalorder %s70, %s71
      %p82 = scmp.eq.s32.totalorder %s22, 0
      %p83 = por %p81, %p82
      %p84 = scmp.ne.s32.totalorder %s70, %s71
      %p85 = scmp.eq.s32.totalorder %s23, 3
      %p86 = por %p84, %p85
      %p88 = scmp.ne.s32.totalorder %s71, %s87
      %p89 = scmp.eq.s32.totalorder %s23, 0
      %p90 = por %p88, %p89
      %s91 = ssub.s32 %s25, %s32
      %p92 = scmp.eq.s32.totalorder %s91, 0
      %s94 = sadd.s32 %s93, 1
      %s95 = scalar_select %p92, %s93, %s94
      %p98 = pneg %p92
      %p99 = scmp.eq.s32.totalorder %s17, 3
      %p100 = por %p98, %p99
      %p101 = scmp.ne.s32.totalorder %s93, %s96
      %p102 = scmp.eq.s32.totalorder %s17, 0
      %p103 = por %p101, %p102
      %p104 = scmp.ne.s32.totalorder %s93, %s96
      %p105 = scmp.eq.s32.totalorder %s22, 3
      %p106 = por %p104, %p105
      %p107 = scmp.ne.s32.totalorder %s96, %s97
      %p108 = scmp.eq.s32.totalorder %s22, 0
      %p109 = por %p107, %p108
      %p110 = scmp.ne.s32.totalorder %s96, %s97
      %p111 = scmp.eq.s32.totalorder %s23, 3
      %p112 = por %p110, %p111
      %p114 = scmp.ne.s32.totalorder %s97, %s113
      %p115 = scmp.eq.s32.totalorder %s23, 0
      %p116 = por %p114, %p115
      %s118 = sadd.s32 %s117, 1
      %p121 = scmp.eq.s32.totalorder %s17, 3
      %p122 = scmp.ne.s32.totalorder %s117, %s119
      %p123 = scmp.eq.s32.totalorder %s17, 0
      %p124 = por %p122, %p123
      %p125 = scmp.ne.s32.totalorder %s117, %s119
      %p126 = scmp.eq.s32.totalorder %s22, 3
      %p127 = por %p125, %p126
      %p128 = scmp.ne.s32.totalorder %s119, %s120
      %p129 = scmp.eq.s32.totalorder %s22, 0
      %p130 = por %p128, %p129
      %p131 = scmp.ne.s32.totalorder %s119, %s120
      %p132 = scmp.eq.s32.totalorder %s23, 3
      %p133 = por %p131, %p132
      %p135 = scmp.ne.s32.totalorder %s120, %s134
      %p136 = scmp.eq.s32.totalorder %s23, 0
      %p137 = por %p135, %p136
      %s139 = sadd.s32 %s138, 1
      %p142 = scmp.eq.s32.totalorder %s17, 3
      %p143 = scmp.ne.s32.totalorder %s138, %s140
      %p144 = scmp.eq.s32.totalorder %s17, 0
      %p145 = por %p143, %p144
      %p146 = scmp.ne.s32.totalorder %s138, %s140
      %p147 = scmp.eq.s32.totalorder %s22, 3
      %p148 = por %p146, %p147
      %p149 = scmp.ne.s32.totalorder %s140, %s141
      %p150 = scmp.eq.s32.totalorder %s22, 0
      %p151 = por %p149, %p150
      %p152 = scmp.ne.s32.totalorder %s140, %s141
      %p153 = scmp.eq.s32.totalorder %s23, 3
      %p154 = por %p152, %p153
      %p156 = scmp.ne.s32.totalorder %s141, %s155
      %p157 = scmp.eq.s32.totalorder %s23, 0
      %p158 = por %p156, %p157
      %s159 = ssub.s32 %s24, %s36
      %s160 = ssub.s32 %s25, %s32
      %s161 = sor.u32 %s159, %s160
      %p162 = scmp.eq.s32.totalorder %s161, 0
      %s164 = sadd.s32 %s163, 1
      %s165 = scalar_select %p162, %s163, %s164
      %p168 = pneg %p162
      %p169 = scmp.eq.s32.totalorder %s17, 3
      %p170 = por %p168, %p169
      %p171 = scmp.ne.s32.totalorder %s163, %s166
      %p172 = scmp.eq.s32.totalorder %s17, 0
      %p173 = por %p171, %p172
      %p174 = scmp.ne.s32.totalorder %s163, %s166
      %p175 = scmp.eq.s32.totalorder %s22, 3
      %p176 = por %p174, %p175
      %p177 = scmp.ne.s32.totalorder %s166, %s167
      %p178 = scmp.eq.s32.totalorder %s22, 0
      %p179 = por %p177, %p178
      %p180 = scmp.ne.s32.totalorder %s166, %s167
      %p181 = scmp.eq.s32.totalorder %s23, 3
      %p182 = por %p180, %p181
      %p184 = scmp.ne.s32.totalorder %s167, %s183
      %p185 = scmp.eq.s32.totalorder %s23, 0
      %p186 = por %p184, %p185
      %p187 = scmp.le.s32.totalorder 1, %s17
      %p188 = scmp.lt.s32.totalorder %s17, 5
      %p189 = pnand %p187, %p188
      %p190 = pneg %p189
      // Predicated region
      $region9: #{tpu_custom_call.1} parent=5 // pred_check
        _
      $region10: #{tpu_custom_call.1} parent=5 // pred_check_branch
        %192 = sbr.rel (%p189) target = $region12
      $region11: #{tpu_custom_call.1} parent=5 // pred_region
        %s193 = ssub.s32 %s17, 1
        // Predicated region
        $region13: #{tpu_custom_call.1} parent=11 // pred_check
          %p194 = pneg %p130
        $region14: #{tpu_custom_call.1} parent=11 // pred_check_branch
          %196 = sbr.rel (%p194) target = $region16
        $region15: #{tpu_custom_call.1} parent=11 // pred_region
          _
        $region16: #{tpu_custom_call.1} parent=11 // pred_fallthru
          _
        // Predicated region
        $region17: #{tpu_custom_call.1} parent=11 // pred_check
          %p197 = pneg %p151
        $region18: #{tpu_custom_call.1} parent=11 // pred_check_branch
          %199 = sbr.rel (%p197) target = $region20
        $region19: #{tpu_custom_call.1} parent=11 // pred_region
          _
        $region20: #{tpu_custom_call.1} parent=11 // pred_fallthru
          _
      $region12: #{tpu_custom_call.1} parent=5 // pred_fallthru
        _
      %p200 = scmp.lt.s32.totalorder %s17, 4
      // Predicated region
      $region21: #{tpu_custom_call.1} parent=5 // pred_check
        %p201 = pneg %p200
      $region22: #{tpu_custom_call.1} parent=5 // pred_check_branch
        %203 = sbr.rel (%p201) target = $region24
      $region23: #{tpu_custom_call.1} parent=5 // pred_region
        // Predicated region
        $region25: #{tpu_custom_call.1} parent=23 // pred_check
          %p204 = pneg %p51
        $region26: #{tpu_custom_call.1} parent=23 // pred_check_branch
          %206 = sbr.rel (%p204) target = $region28
        $region27: #{tpu_custom_call.1} parent=23 // pred_region
          %s207 = sand.u32 %s41, 1
          %s208 = scalar_lea.sflag [#allocation3], %s207
          %s209 = sand.u32 %s41, 1
          %s210 = smul.addr %s209, 256
          %s211 = scalar_lea.vmem [#allocation2], %s210
          %s213 = ssub.s32 4096, 4096
          %214 = vsyncadd %s208, %s213
          %s215 = smul.addr %s24, 64
          %s216 = sadd.s32 %s25, %s215
          %s217 = smul.addr %s216, 128
          %s218 = scalar_lea.hbm %s0, %s217
          %s219 = sshll.u32 %s211, 4
          %s220 = int_to_ptr.vmem [resolvable:$true] %s219
          %225 = dma.hbm_to_vmem [thread:$0]  %s218, 4096, %s220, %s208, 256, 128, 8
        $region28: #{tpu_custom_call.1} parent=23 // pred_fallthru
          _
        // Predicated region
        $region29: #{tpu_custom_call.1} parent=23 // pred_check
          %p226 = pneg %p77
        $region30: #{tpu_custom_call.1} parent=23 // pred_check_branch
          %228 = sbr.rel (%p226) target = $region32
        $region31: #{tpu_custom_call.1} parent=23 // pred_region
          %s229 = sand.u32 %s67, 1
          %s230 = sand.u32 %s67, 1
          %s231 = smul.addr %s230, 16
          %s232 = scalar_lea.vmem [#allocation5], %s231
          %s233 = smul.addr %s25, 8
          %s234 = scalar_lea.vmem %s1, %s233
          // Predicated region
          $region33: #{tpu_custom_call.1} parent=31 // pred_check
            _
          $region34: #{tpu_custom_call.1} parent=31 // pred_check_branch
            %236 = sbr.rel (0) target = $region36
          $region35: #{tpu_custom_call.1} parent=31 // pred_region
            // Predicated region
            $region37: #{tpu_custom_call.1} parent=35 // pred_check
              _
            $region38: #{tpu_custom_call.1} parent=35 // pred_check_branch
              %238 = sbr.rel (0) target = $region40
            $region39: #{tpu_custom_call.1} parent=35 // pred_region
              // Predicated region
              $region52: #{tpu_custom_call.1} parent=39 // pred_check
                _
              $region53: #{tpu_custom_call.1} parent=39 // pred_check_branch
                %255 = sbr.rel (0) target = $region55
              $region54: #{tpu_custom_call.1} parent=39 // pred_region
                loop: start=0, step=1, limit=1
                $region56: #{tpu_custom_call.1} parent=54 // loop_pre_header
                  _
                $region57: #{tpu_custom_call.1} parent=54 // loop_header
                  %s257 = sphi 0, %s261
                  %p258 = scmp.ge.s32.totalorder %s257, 1
                  %s262 = sphi %s234, %s234
                  %s263 = sphi %s232, %s232
                $region58: #{tpu_custom_call.1} parent=54 // loop_header_branch
                  %260 = sbr.rel (%p258) target = $region62
                $region59: #{tpu_custom_call.1} parent=54 // loop_body
                  %v264 = vld [vmem:[%s262] sm:$0xff]
                  %265 = vst [vmem:[%s263] sm:$0xff] %v264
                  %v266 = vld [vmem:[%s262 + $0x10] sm:$0xff]
                  %267 = vst [vmem:[%s263 + $0x8] sm:$0xff] %v266
                $region60: #{tpu_custom_call.1} parent=54 // loop_footer
                  %s261 = sadd.s32 1, %s257
                $region61: #{tpu_custom_call.1} parent=54 // loop_footer_branch
                  %256 = sbr.rel target = $region57
                $region62: #{tpu_custom_call.1} parent=54 // loop_exit
                  _
              $region55: #{tpu_custom_call.1} parent=39 // pred_fallthru
                _
              // Predicated region
              $region63: #{tpu_custom_call.1} parent=39 // pred_check
                _
              $region64: #{tpu_custom_call.1} parent=39 // pred_check_branch
                %269 = sbr.rel target = $region66
              $region65: #{tpu_custom_call.1} parent=39 // pred_region
                _
              $region66: #{tpu_custom_call.1} parent=39 // pred_fallthru
                _
            $region40: #{tpu_custom_call.1} parent=35 // pred_fallthru
              _
            // Predicated region
            $region41: #{tpu_custom_call.1} parent=35 // pred_check
              _
            $region42: #{tpu_custom_call.1} parent=35 // pred_check_branch
              %240 = sbr.rel target = $region44
            $region43: #{tpu_custom_call.1} parent=35 // pred_region
              loop: start=0, step=1, limit=1
              $region45: #{tpu_custom_call.1} parent=43 // loop_pre_header
                _
              $region46: #{tpu_custom_call.1} parent=43 // loop_header
                %s243 = sphi 0, %s247
                %p244 = scmp.ge.s32.totalorder %s243, 1
                %s248 = sphi %s234, %s234
                %s249 = sphi %s232, %s232
              $region47: #{tpu_custom_call.1} parent=43 // loop_header_branch
                %246 = sbr.rel (%p244) target = $region51
              $region48: #{tpu_custom_call.1} parent=43 // loop_body
                %v250 = vld [vmem:[%s248] sm:$0xff]
                %251 = vst [vmem:[%s249] sm:$0xff] %v250
                %v252 = vld [vmem:[%s248 + $0x10] sm:$0xff]
                %253 = vst [vmem:[%s249 + $0x8] sm:$0xff] %v252
              $region49: #{tpu_custom_call.1} parent=43 // loop_footer
                %s247 = sadd.s32 1, %s243
              $region50: #{tpu_custom_call.1} parent=43 // loop_footer_branch
                %242 = sbr.rel target = $region46
              $region51: #{tpu_custom_call.1} parent=43 // loop_exit
                _
            $region44: #{tpu_custom_call.1} parent=35 // pred_fallthru
              _
          $region36: #{tpu_custom_call.1} parent=31 // pred_fallthru
            _
          %270 = vnop
        $region32: #{tpu_custom_call.1} parent=23 // pred_fallthru
          _
        // Predicated region
        $region67: #{tpu_custom_call.1} parent=23 // pred_check
          %p271 = pneg %p103
        $region68: #{tpu_custom_call.1} parent=23 // pred_check_branch
          %273 = sbr.rel (%p271) target = $region70
        $region69: #{tpu_custom_call.1} parent=23 // pred_region
          %p274 = scmp.lt.s32.totalorder %s25, 1
          %s275 = scalar_select %p274, %s25, 1
          %s276 = scalar_lea.vmem %s2, %s275
        $region70: #{tpu_custom_call.1} parent=23 // pred_fallthru
          _
      $region24: #{tpu_custom_call.1} parent=5 // pred_fallthru
        _
      %p277 = scmp.le.s32.totalorder 1, %s17
      %p278 = scmp.lt.s32.totalorder %s17, 5
      %p279 = pnand %p277, %p278
      %p280 = pneg %p279
      // Predicated region
      $region71: #{tpu_custom_call.1} parent=5 // pred_check
        _
      $region72: #{tpu_custom_call.1} parent=5 // pred_check_branch
        %282 = sbr.rel (%p279) target = $region74
      $region73: #{tpu_custom_call.1} parent=5 // pred_region
        %s283 = ssub.s32 %s17, 1
        %s284 = sand.u32 %s44, 1
        %s285 = scalar_lea.sflag [#allocation3], %s284
        %s286 = sand.u32 %s44, 1
        %s287 = smul.addr %s286, 256
        %s288 = scalar_lea.vmem [#allocation2], %s287
        // Predicated region
        $region75: #{tpu_custom_call.1} parent=73 // pred_check
          %p289 = pneg %p57
        $region76: #{tpu_custom_call.1} parent=73 // pred_check_branch
          %291 = sbr.rel (%p289) target = $region78
        $region77: #{tpu_custom_call.1} parent=73 // pred_region
          %292 = dma.done %s285, 4096
        $region78: #{tpu_custom_call.1} parent=73 // pred_fallthru
          _
        %s293 = sand.u32 %s70, 1
        %s294 = sand.u32 %s70, 1
        %s295 = smul.addr %s294, 16
        %s296 = scalar_lea.vmem [#allocation5], %s295
        // Predicated region
        $region79: #{tpu_custom_call.1} parent=73 // pred_check
          %p297 = pneg %p83
        $region80: #{tpu_custom_call.1} parent=73 // pred_check_branch
          %299 = sbr.rel (%p297) target = $region82
        $region81: #{tpu_custom_call.1} parent=73 // pred_region
          _
        $region82: #{tpu_custom_call.1} parent=73 // pred_fallthru
          _
        %s300 = sand.u32 %s44, 1
        %s301 = scalar_lea.sflag [#allocation3], %s300
        %s302 = sand.u32 %s44, 1
        %s303 = smul.addr %s302, 256
        %s304 = scalar_lea.vmem [#allocation2], %s303
        %p305 = pneg %p57
        %p306 = pneg %p54
        %s307 = sand.u32 %s70, 1
        %s308 = sand.u32 %s70, 1
        %s309 = smul.addr %s308, 16
        %s310 = scalar_lea.vmem [#allocation5], %s309
        %p311 = pneg %p83
        %p312 = pneg %p80
        %p313 = scmp.lt.s32.totalorder %s27, 1
        %s314 = scalar_select %p313, %s27, 1
        %s315 = scalar_lea.vmem %s2, %s314
        %p316 = pneg %p109
        %p317 = pneg %p106
        %p318 = pneg %p130
        %p319 = pneg %p127
        %p320 = pneg %p151
        %p321 = pneg %p148
        %p322 = pneg %p179
        %p323 = pneg %p176
        %s324 = sand.u32 %s166, 1
        %s325 = scalar_lea.sflag [#allocation4], %s324
        %s326 = sand.u32 %s166, 1
        %s327 = smul.addr %s326, 256
        %s328 = scalar_lea.vmem [#allocation6], %s327
        %p329 = scmp.lt.s32.totalorder %s27, 1
        %s330 = scalar_select %p329, %s27, 1
        %s331 = scalar_lea.vmem %s2, %s330
        %v332 = vld [vmem:[%s288] sm:$0xff]
        %v333 = vld [vmem:[%s288 + $0x8] sm:$0xff]
        %v334 = vld [vmem:[%s288 + $0x10] sm:$0xff]
        %v335 = vld [vmem:[%s288 + $0x18] sm:$0xff]
        %v336 = vld [vmem:[%s288 + $0x20] sm:$0xff]
        %v337 = vld [vmem:[%s288 + $0x28] sm:$0xff]
        %v338 = vld [vmem:[%s288 + $0x30] sm:$0xff]
        %v339 = vld [vmem:[%s288 + $0x38] sm:$0xff]
        %v340 = vld [vmem:[%s288 + $0x40] sm:$0xff]
        %v341 = vld [vmem:[%s288 + $0x48] sm:$0xff]
        %v342 = vld [vmem:[%s288 + $0x50] sm:$0xff]
        %v343 = vld [vmem:[%s288 + $0x58] sm:$0xff]
        %v344 = vld [vmem:[%s288 + $0x60] sm:$0xff]
        %v345 = vld [vmem:[%s288 + $0x68] sm:$0xff]
        %v346 = vld [vmem:[%s288 + $0x70] sm:$0xff]
        %v347 = vld [vmem:[%s288 + $0x78] sm:$0xff]
        %v348 = vld [vmem:[%s288 + $0x80] sm:$0xff]
        %v349 = vld [vmem:[%s288 + $0x88] sm:$0xff]
        %v350 = vld [vmem:[%s288 + $0x90] sm:$0xff]
        %v351 = vld [vmem:[%s288 + $0x98] sm:$0xff]
        %v352 = vld [vmem:[%s288 + $0xa0] sm:$0xff]
        %v353 = vld [vmem:[%s288 + $0xa8] sm:$0xff]
        %v354 = vld [vmem:[%s288 + $0xb0] sm:$0xff]
        %v355 = vld [vmem:[%s288 + $0xb8] sm:$0xff]
        %v356 = vld [vmem:[%s288 + $0xc0] sm:$0xff]
        %v357 = vld [vmem:[%s288 + $0xc8] sm:$0xff]
        %v358 = vld [vmem:[%s288 + $0xd0] sm:$0xff]
        %v359 = vld [vmem:[%s288 + $0xd8] sm:$0xff]
        %v360 = vld [vmem:[%s288 + $0xe0] sm:$0xff]
        %v361 = vld [vmem:[%s288 + $0xe8] sm:$0xff]
        %v362 = vld [vmem:[%s288 + $0xf0] sm:$0xff]
        %v363 = vld [vmem:[%s288 + $0xf8] sm:$0xff]
        %v364 = vld [vmem:[%s296] sm:$0xff]
        %v365 = vld [vmem:[%s296 + $0x8] sm:$0x1]
        %v366 = vld [vmem:[%s331] sm:$0x1]
        %v367 = vld [vmem:[%s3] sm:$0xff]
        %v368 = vld [vmem:[%s3 + $0x8] sm:$0xff]
        %v369 = vld [vmem:[%s3 + $0x10] sm:$0xff]
        %v370 = vld [vmem:[%s3 + $0x18] sm:$0xff]
        %v371 = vld [vmem:[%s3 + $0x20] sm:$0xff]
        %v372 = vld [vmem:[%s3 + $0x28] sm:$0xff]
        %v373 = vld [vmem:[%s3 + $0x30] sm:$0xff]
        %v374 = vld [vmem:[%s3 + $0x38] sm:$0xff]
        %v375 = vld [vmem:[%s3 + $0x40] sm:$0xff]
        %v376 = vld [vmem:[%s3 + $0x48] sm:$0xff]
        %v377 = vld [vmem:[%s3 + $0x50] sm:$0xff]
        %v378 = vld [vmem:[%s3 + $0x58] sm:$0xff]
        %v379 = vld [vmem:[%s3 + $0x60] sm:$0xff]
        %v380 = vld [vmem:[%s3 + $0x68] sm:$0xff]
        %v381 = vld [vmem:[%s3 + $0x70] sm:$0xff]
        %v382 = vld [vmem:[%s3 + $0x78] sm:$0xff]
        %v383 = vld [vmem:[%s3 + $0x80] sm:$0xff]
        %v384 = vld [vmem:[%s3 + $0x88] sm:$0xff]
        %v385 = vld [vmem:[%s3 + $0x90] sm:$0xff]
        %v386 = vld [vmem:[%s3 + $0x98] sm:$0xff]
        %v387 = vld [vmem:[%s3 + $0xa0] sm:$0xff]
        %v388 = vld [vmem:[%s3 + $0xa8] sm:$0xff]
        %v389 = vld [vmem:[%s3 + $0xb0] sm:$0xff]
        %v390 = vld [vmem:[%s3 + $0xb8] sm:$0xff]
        %v391 = vld [vmem:[%s3 + $0xc0] sm:$0xff]
        %v392 = vld [vmem:[%s3 + $0xc8] sm:$0xff]
        %v393 = vld [vmem:[%s3 + $0xd0] sm:$0xff]
        %v394 = vld [vmem:[%s3 + $0xd8] sm:$0xff]
        %v395 = vld [vmem:[%s3 + $0xe0] sm:$0xff]
        %v396 = vld [vmem:[%s3 + $0xe8] sm:$0xff]
        %v397 = vld [vmem:[%s3 + $0xf0] sm:$0xff]
        %v398 = vld [vmem:[%s3 + $0xf8] sm:$0xff]
        %v399 = vld [vmem:[%s4] sm:$0xff]
        %v400 = vld [vmem:[%s4 + $0x8] sm:$0xff]
        %v401 = vld [vmem:[%s4 + $0x10] sm:$0xff]
        %v402 = vld [vmem:[%s4 + $0x18] sm:$0xff]
        %v403 = vld [vmem:[%s4 + $0x20] sm:$0xff]
        %v404 = vld [vmem:[%s4 + $0x28] sm:$0xff]
        %v405 = vld [vmem:[%s4 + $0x30] sm:$0xff]
        %v406 = vld [vmem:[%s4 + $0x38] sm:$0xff]
        %v407 = vld [vmem:[%s4 + $0x40] sm:$0xff]
        %v408 = vld [vmem:[%s4 + $0x48] sm:$0xff]
        %v409 = vld [vmem:[%s4 + $0x50] sm:$0xff]
        %v410 = vld [vmem:[%s4 + $0x58] sm:$0xff]
        %v411 = vld [vmem:[%s4 + $0x60] sm:$0xff]
        %v412 = vld [vmem:[%s4 + $0x68] sm:$0xff]
        %v413 = vld [vmem:[%s4 + $0x70] sm:$0xff]
        %v414 = vld [vmem:[%s4 + $0x78] sm:$0xff]
        %v415 = vld [vmem:[%s4 + $0x80] sm:$0xff]
        %v416 = vld [vmem:[%s4 + $0x88] sm:$0xff]
        %v417 = vld [vmem:[%s4 + $0x90] sm:$0xff]
        %v418 = vld [vmem:[%s4 + $0x98] sm:$0xff]
        %v419 = vld [vmem:[%s4 + $0xa0] sm:$0xff]
        %v420 = vld [vmem:[%s4 + $0xa8] sm:$0xff]
        %v421 = vld [vmem:[%s4 + $0xb0] sm:$0xff]
        %v422 = vld [vmem:[%s4 + $0xb8] sm:$0xff]
        %v423 = vld [vmem:[%s4 + $0xc0] sm:$0xff]
        %v424 = vld [vmem:[%s4 + $0xc8] sm:$0xff]
        %v425 = vld [vmem:[%s4 + $0xd0] sm:$0xff]
        %v426 = vld [vmem:[%s4 + $0xd8] sm:$0xff]
        %v427 = vld [vmem:[%s4 + $0xe0] sm:$0xff]
        %v428 = vld [vmem:[%s4 + $0xe8] sm:$0xff]
        %v429 = vld [vmem:[%s4 + $0xf0] sm:$0xff]
        %v430 = vld [vmem:[%s4 + $0xf8] sm:$0xff]
        %v431 = vrot.slane %v332, 7
        %v432 = vrot.slane %v333, 7
        %v433 = vrot.slane %v334, 7
        %v434 = vrot.slane %v335, 7
        %v435 = vrot.slane %v336, 7
        %v436 = vrot.slane %v337, 7
        %v437 = vrot.slane %v338, 7
        %v438 = vrot.slane %v339, 7
        %v439 = vrot.slane %v340, 7
        %v440 = vrot.slane %v341, 7
        %v441 = vrot.slane %v342, 7
        %v442 = vrot.slane %v343, 7
        %v443 = vrot.slane %v344, 7
        %v444 = vrot.slane %v345, 7
        %v445 = vrot.slane %v346, 7
        %v446 = vrot.slane %v347, 7
        %v447 = vrot.slane %v348, 7
        %v448 = vrot.slane %v349, 7
        %v449 = vrot.slane %v350, 7
        %v450 = vrot.slane %v351, 7
        %v451 = vrot.slane %v352, 7
        %v452 = vrot.slane %v353, 7
        %v453 = vrot.slane %v354, 7
        %v454 = vrot.slane %v355, 7
        %v455 = vrot.slane %v356, 7
        %v456 = vrot.slane %v357, 7
        %v457 = vrot.slane %v358, 7
        %v458 = vrot.slane %v359, 7
        %v459 = vrot.slane %v360, 7
        %v460 = vrot.slane %v361, 7
        %v461 = vrot.slane %v362, 7
        %v462 = vrot.slane %v363, 7
        %v463 = vlaneseq
        %v464 = vshrl.u32 %v463, 7
        %vm465 = vcmp.lt.s32.totalorder %v464, 1
        %v466 = vsel %vm465, %v461, %v462
        %v467 = vsel %vm465, %v460, %v461
        %v468 = vsel %vm465, %v459, %v460
        %v469 = vsel %vm465, %v458, %v459
        %v470 = vsel %vm465, %v457, %v458
        %v471 = vsel %vm465, %v456, %v457
        %v472 = vsel %vm465, %v455, %v456
        %v473 = vsel %vm465, %v454, %v455
        %v474 = vsel %vm465, %v453, %v454
        %v475 = vsel %vm465, %v452, %v453
        %v476 = vsel %vm465, %v451, %v452
        %v477 = vsel %vm465, %v450, %v451
        %v478 = vsel %vm465, %v449, %v450
        %v479 = vsel %vm465, %v448, %v449
        %v480 = vsel %vm465, %v447, %v448
        %v481 = vsel %vm465, %v446, %v447
        %v482 = vsel %vm465, %v445, %v446
        %v483 = vsel %vm465, %v444, %v445
        %v484 = vsel %vm465, %v443, %v444
        %v485 = vsel %vm465, %v442, %v443
        %v486 = vsel %vm465, %v441, %v442
        %v487 = vsel %vm465, %v440, %v441
        %v488 = vsel %vm465, %v439, %v440
        %v489 = vsel %vm465, %v438, %v439
        %v490 = vsel %vm465, %v437, %v438
        %v491 = vsel %vm465, %v436, %v437
        %v492 = vsel %vm465, %v435, %v436
        %v493 = vsel %vm465, %v434, %v435
        %v494 = vsel %vm465, %v433, %v434
        %v495 = vsel %vm465, %v432, %v433
        %v496 = vsel %vm465, %v431, %v432
        %v497 = vsel %vm465, %v462, %v431
        %499 = vset.pattern.permute.xlu0 0
        %500 = vperm.xlu0 %499, %v367
        %v501 = vpop.permute.xlu0 %500
        %504 = vset.pattern.permute.xlu0 0
        %505 = vperm.xlu0 %504, %v368
        %v506 = vpop.permute.xlu0 %505
        %509 = vset.pattern.permute.xlu0 0
        %510 = vperm.xlu0 %509, %v369
        %v511 = vpop.permute.xlu0 %510
        %514 = vset.pattern.permute.xlu0 0
        %515 = vperm.xlu0 %514, %v370
        %v516 = vpop.permute.xlu0 %515
        %519 = vset.pattern.permute.xlu0 0
        %520 = vperm.xlu0 %519, %v371
        %v521 = vpop.permute.xlu0 %520
        %524 = vset.pattern.permute.xlu0 0
        %525 = vperm.xlu0 %524, %v372
        %v526 = vpop.permute.xlu0 %525
        %529 = vset.pattern.permute.xlu0 0
        %530 = vperm.xlu0 %529, %v373
        %v531 = vpop.permute.xlu0 %530
        %534 = vset.pattern.permute.xlu0 0
        %535 = vperm.xlu0 %534, %v374
        %v536 = vpop.permute.xlu0 %535
        %539 = vset.pattern.permute.xlu0 0
        %540 = vperm.xlu0 %539, %v375
        %v541 = vpop.permute.xlu0 %540
        %544 = vset.pattern.permute.xlu0 0
        %545 = vperm.xlu0 %544, %v376
        %v546 = vpop.permute.xlu0 %545
        %549 = vset.pattern.permute.xlu0 0
        %550 = vperm.xlu0 %549, %v377
        %v551 = vpop.permute.xlu0 %550
        %554 = vset.pattern.permute.xlu0 0
        %555 = vperm.xlu0 %554, %v378
        %v556 = vpop.permute.xlu0 %555
        %559 = vset.pattern.permute.xlu0 0
        %560 = vperm.xlu0 %559, %v379
        %v561 = vpop.permute.xlu0 %560
        %564 = vset.pattern.permute.xlu0 0
        %565 = vperm.xlu0 %564, %v380
        %v566 = vpop.permute.xlu0 %565
        %569 = vset.pattern.permute.xlu0 0
        %570 = vperm.xlu0 %569, %v381
        %v571 = vpop.permute.xlu0 %570
        %574 = vset.pattern.permute.xlu0 0
        %575 = vperm.xlu0 %574, %v382
        %v576 = vpop.permute.xlu0 %575
        %579 = vset.pattern.permute.xlu0 0
        %580 = vperm.xlu0 %579, %v383
        %v581 = vpop.permute.xlu0 %580
        %584 = vset.pattern.permute.xlu0 0
        %585 = vperm.xlu0 %584, %v384
        %v586 = vpop.permute.xlu0 %585
        %589 = vset.pattern.permute.xlu0 0
        %590 = vperm.xlu0 %589, %v385
        %v591 = vpop.permute.xlu0 %590
        %594 = vset.pattern.permute.xlu0 0
        %595 = vperm.xlu0 %594, %v386
        %v596 = vpop.permute.xlu0 %595
        %599 = vset.pattern.permute.xlu0 0
        %600 = vperm.xlu0 %599, %v387
        %v601 = vpop.permute.xlu0 %600
        %604 = vset.pattern.permute.xlu0 0
        %605 = vperm.xlu0 %604, %v388
        %v606 = vpop.permute.xlu0 %605
        %609 = vset.pattern.permute.xlu0 0
        %610 = vperm.xlu0 %609, %v389
        %v611 = vpop.permute.xlu0 %610
        %614 = vset.pattern.permute.xlu0 0
        %615 = vperm.xlu0 %614, %v390
        %v616 = vpop.permute.xlu0 %615
        %619 = vset.pattern.permute.xlu0 0
        %620 = vperm.xlu0 %619, %v391
        %v621 = vpop.permute.xlu0 %620
        %624 = vset.pattern.permute.xlu0 0
        %625 = vperm.xlu0 %624, %v392
        %v626 = vpop.permute.xlu0 %625
        %629 = vset.pattern.permute.xlu0 0
        %630 = vperm.xlu0 %629, %v393
        %v631 = vpop.permute.xlu0 %630
        %634 = vset.pattern.permute.xlu0 0
        %635 = vperm.xlu0 %634, %v394
        %v636 = vpop.permute.xlu0 %635
        %639 = vset.pattern.permute.xlu0 0
        %640 = vperm.xlu0 %639, %v395
        %v641 = vpop.permute.xlu0 %640
        %644 = vset.pattern.permute.xlu0 0
        %645 = vperm.xlu0 %644, %v396
        %v646 = vpop.permute.xlu0 %645
        %649 = vset.pattern.permute.xlu0 0
        %650 = vperm.xlu0 %649, %v397
        %v651 = vpop.permute.xlu0 %650
        %654 = vset.pattern.permute.xlu0 0
        %655 = vperm.xlu0 %654, %v398
        %v656 = vpop.permute.xlu0 %655
        %v658 = vmul.f32 %v497, %v501
        %v659 = vmul.f32 %v496, %v506
        %v660 = vmul.f32 %v495, %v511
        %v661 = vmul.f32 %v494, %v516
        %v662 = vmul.f32 %v493, %v521
        %v663 = vmul.f32 %v492, %v526
        %v664 = vmul.f32 %v491, %v531
        %v665 = vmul.f32 %v490, %v536
        %v666 = vmul.f32 %v489, %v541
        %v667 = vmul.f32 %v488, %v546
        %v668 = vmul.f32 %v487, %v551
        %v669 = vmul.f32 %v486, %v556
        %v670 = vmul.f32 %v485, %v561
        %v671 = vmul.f32 %v484, %v566
        %v672 = vmul.f32 %v483, %v571
        %v673 = vmul.f32 %v482, %v576
        %v674 = vmul.f32 %v481, %v581
        %v675 = vmul.f32 %v480, %v586
        %v676 = vmul.f32 %v479, %v591
        %v677 = vmul.f32 %v478, %v596
        %v678 = vmul.f32 %v477, %v601
        %v679 = vmul.f32 %v476, %v606
        %v680 = vmul.f32 %v475, %v611
        %v681 = vmul.f32 %v474, %v616
        %v682 = vmul.f32 %v473, %v621
        %v683 = vmul.f32 %v472, %v626
        %v684 = vmul.f32 %v471, %v631
        %v685 = vmul.f32 %v470, %v636
        %v686 = vmul.f32 %v469, %v641
        %v687 = vmul.f32 %v468, %v646
        %v688 = vmul.f32 %v467, %v651
        %v689 = vmul.f32 %v466, %v656
        %v690 = vrot.slane %v332, 1
        %v691 = vrot.slane %v333, 1
        %v692 = vrot.slane %v334, 1
        %v693 = vrot.slane %v335, 1
        %v694 = vrot.slane %v336, 1
        %v695 = vrot.slane %v337, 1
        %v696 = vrot.slane %v338, 1
        %v697 = vrot.slane %v339, 1
        %v698 = vrot.slane %v340, 1
        %v699 = vrot.slane %v341, 1
        %v700 = vrot.slane %v342, 1
        %v701 = vrot.slane %v343, 1
        %v702 = vrot.slane %v344, 1
        %v703 = vrot.slane %v345, 1
        %v704 = vrot.slane %v346, 1
        %v705 = vrot.slane %v347, 1
        %v706 = vrot.slane %v348, 1
        %v707 = vrot.slane %v349, 1
        %v708 = vrot.slane %v350, 1
        %v709 = vrot.slane %v351, 1
        %v710 = vrot.slane %v352, 1
        %v711 = vrot.slane %v353, 1
        %v712 = vrot.slane %v354, 1
        %v713 = vrot.slane %v355, 1
        %v714 = vrot.slane %v356, 1
        %v715 = vrot.slane %v357, 1
        %v716 = vrot.slane %v358, 1
        %v717 = vrot.slane %v359, 1
        %v718 = vrot.slane %v360, 1
        %v719 = vrot.slane %v361, 1
        %v720 = vrot.slane %v362, 1
        %v721 = vrot.slane %v363, 1
        %vm722 = vcmp.lt.s32.totalorder %v464, 7
        %v723 = vsel %vm722, %v720, %v721
        %v724 = vsel %vm722, %v719, %v720
        %v725 = vsel %vm722, %v718, %v719
        %v726 = vsel %vm722, %v717, %v718
        %v727 = vsel %vm722, %v716, %v717
        %v728 = vsel %vm722, %v715, %v716
        %v729 = vsel %vm722, %v714, %v715
        %v730 = vsel %vm722, %v713, %v714
        %v731 = vsel %vm722, %v712, %v713
        %v732 = vsel %vm722, %v711, %v712
        %v733 = vsel %vm722, %v710, %v711
        %v734 = vsel %vm722, %v709, %v710
        %v735 = vsel %vm722, %v708, %v709
        %v736 = vsel %vm722, %v707, %v708
        %v737 = vsel %vm722, %v706, %v707
        %v738 = vsel %vm722, %v705, %v706
        %v739 = vsel %vm722, %v704, %v705
        %v740 = vsel %vm722, %v703, %v704
        %v741 = vsel %vm722, %v702, %v703
        %v742 = vsel %vm722, %v701, %v702
        %v743 = vsel %vm722, %v700, %v701
        %v744 = vsel %vm722, %v699, %v700
        %v745 = vsel %vm722, %v698, %v699
        %v746 = vsel %vm722, %v697, %v698
        %v747 = vsel %vm722, %v696, %v697
        %v748 = vsel %vm722, %v695, %v696
        %v749 = vsel %vm722, %v694, %v695
        %v750 = vsel %vm722, %v693, %v694
        %v751 = vsel %vm722, %v692, %v693
        %v752 = vsel %vm722, %v691, %v692
        %v753 = vsel %vm722, %v690, %v691
        %v754 = vsel %vm722, %v721, %v690
        %756 = vset.pattern.permute.xlu0 0
        %757 = vperm.xlu0 %756, %v399
        %v758 = vpop.permute.xlu0 %757
        %761 = vset.pattern.permute.xlu0 0
        %762 = vperm.xlu0 %761, %v400
        %v763 = vpop.permute.xlu0 %762
        %766 = vset.pattern.permute.xlu0 0
        %767 = vperm.xlu0 %766, %v401
        %v768 = vpop.permute.xlu0 %767
        %771 = vset.pattern.permute.xlu0 0
        %772 = vperm.xlu0 %771, %v402
        %v773 = vpop.permute.xlu0 %772
        %776 = vset.pattern.permute.xlu0 0
        %777 = vperm.xlu0 %776, %v403
        %v778 = vpop.permute.xlu0 %777
        %781 = vset.pattern.permute.xlu0 0
        %782 = vperm.xlu0 %781, %v404
        %v783 = vpop.permute.xlu0 %782
        %786 = vset.pattern.permute.xlu0 0
        %787 = vperm.xlu0 %786, %v405
        %v788 = vpop.permute.xlu0 %787
        %791 = vset.pattern.permute.xlu0 0
        %792 = vperm.xlu0 %791, %v406
        %v793 = vpop.permute.xlu0 %792
        %796 = vset.pattern.permute.xlu0 0
        %797 = vperm.xlu0 %796, %v407
        %v798 = vpop.permute.xlu0 %797
        %801 = vset.pattern.permute.xlu0 0
        %802 = vperm.xlu0 %801, %v408
        %v803 = vpop.permute.xlu0 %802
        %806 = vset.pattern.permute.xlu0 0
        %807 = vperm.xlu0 %806, %v409
        %v808 = vpop.permute.xlu0 %807
        %811 = vset.pattern.permute.xlu0 0
        %812 = vperm.xlu0 %811, %v410
        %v813 = vpop.permute.xlu0 %812
        %816 = vset.pattern.permute.xlu0 0
        %817 = vperm.xlu0 %816, %v411
        %v818 = vpop.permute.xlu0 %817
        %821 = vset.pattern.permute.xlu0 0
        %822 = vperm.xlu0 %821, %v412
        %v823 = vpop.permute.xlu0 %822
        %826 = vset.pattern.permute.xlu0 0
        %827 = vperm.xlu0 %826, %v413
        %v828 = vpop.permute.xlu0 %827
        %831 = vset.pattern.permute.xlu0 0
        %832 = vperm.xlu0 %831, %v414
        %v833 = vpop.permute.xlu0 %832
        %836 = vset.pattern.permute.xlu0 0
        %837 = vperm.xlu0 %836, %v415
        %v838 = vpop.permute.xlu0 %837
        %841 = vset.pattern.permute.xlu0 0
        %842 = vperm.xlu0 %841, %v416
        %v843 = vpop.permute.xlu0 %842
        %846 = vset.pattern.permute.xlu0 0
        %847 = vperm.xlu0 %846, %v417
        %v848 = vpop.permute.xlu0 %847
        %851 = vset.pattern.permute.xlu0 0
        %852 = vperm.xlu0 %851, %v418
        %v853 = vpop.permute.xlu0 %852
        %856 = vset.pattern.permute.xlu0 0
        %857 = vperm.xlu0 %856, %v419
        %v858 = vpop.permute.xlu0 %857
        %861 = vset.pattern.permute.xlu0 0
        %862 = vperm.xlu0 %861, %v420
        %v863 = vpop.permute.xlu0 %862
        %866 = vset.pattern.permute.xlu0 0
        %867 = vperm.xlu0 %866, %v421
        %v868 = vpop.permute.xlu0 %867
        %871 = vset.pattern.permute.xlu0 0
        %872 = vperm.xlu0 %871, %v422
        %v873 = vpop.permute.xlu0 %872
        %876 = vset.pattern.permute.xlu0 0
        %877 = vperm.xlu0 %876, %v423
        %v878 = vpop.permute.xlu0 %877
        %881 = vset.pattern.permute.xlu0 0
        %882 = vperm.xlu0 %881, %v424
        %v883 = vpop.permute.xlu0 %882
        %886 = vset.pattern.permute.xlu0 0
        %887 = vperm.xlu0 %886, %v425
        %v888 = vpop.permute.xlu0 %887
        %891 = vset.pattern.permute.xlu0 0
        %892 = vperm.xlu0 %891, %v426
        %v893 = vpop.permute.xlu0 %892
        %896 = vset.pattern.permute.xlu0 0
        %897 = vperm.xlu0 %896, %v427
        %v898 = vpop.permute.xlu0 %897
        %901 = vset.pattern.permute.xlu0 0
        %902 = vperm.xlu0 %901, %v428
        %v903 = vpop.permute.xlu0 %902
        %906 = vset.pattern.permute.xlu0 0
        %907 = vperm.xlu0 %906, %v429
        %v908 = vpop.permute.xlu0 %907
        %911 = vset.pattern.permute.xlu0 0
        %912 = vperm.xlu0 %911, %v430
        %v913 = vpop.permute.xlu0 %912
        %v915 = vmul.f32 %v753, %v758
        %v916 = vmul.f32 %v752, %v763
        %v917 = vmul.f32 %v751, %v768
        %v918 = vmul.f32 %v750, %v773
        %v919 = vmul.f32 %v749, %v778
        %v920 = vmul.f32 %v748, %v783
        %v921 = vmul.f32 %v747, %v788
        %v922 = vmul.f32 %v746, %v793
        %v923 = vmul.f32 %v745, %v798
        %v924 = vmul.f32 %v744, %v803
        %v925 = vmul.f32 %v743, %v808
        %v926 = vmul.f32 %v742, %v813
        %v927 = vmul.f32 %v741, %v818
        %v928 = vmul.f32 %v740, %v823
        %v929 = vmul.f32 %v739, %v828
        %v930 = vmul.f32 %v738, %v833
        %v931 = vmul.f32 %v737, %v838
        %v932 = vmul.f32 %v736, %v843
        %v933 = vmul.f32 %v735, %v848
        %v934 = vmul.f32 %v734, %v853
        %v935 = vmul.f32 %v733, %v858
        %v936 = vmul.f32 %v732, %v863
        %v937 = vmul.f32 %v731, %v868
        %v938 = vmul.f32 %v730, %v873
        %v939 = vmul.f32 %v729, %v878
        %v940 = vmul.f32 %v728, %v883
        %v941 = vmul.f32 %v727, %v888
        %v942 = vmul.f32 %v726, %v893
        %v943 = vmul.f32 %v725, %v898
        %v944 = vmul.f32 %v724, %v903
        %v945 = vmul.f32 %v723, %v908
        %v946 = vmul.f32 %v754, %v913
        %v947 = vlaneseq
        %v948 = vshrl.u32 %v947, 7
        %v949 = vsub.s32 0, %v948
        %v950 = vrot.slane %v364, %v949
        %v951 = vmul.f32 %v658, %v950
        %v952 = vmul.f32 %v659, %v950
        %v953 = vmul.f32 %v660, %v950
        %v954 = vmul.f32 %v661, %v950
        %v955 = vmul.f32 %v662, %v950
        %v956 = vmul.f32 %v663, %v950
        %v957 = vmul.f32 %v664, %v950
        %v958 = vmul.f32 %v665, %v950
        %v959 = vmul.f32 %v666, %v950
        %v960 = vmul.f32 %v667, %v950
        %v961 = vmul.f32 %v668, %v950
        %v962 = vmul.f32 %v669, %v950
        %v963 = vmul.f32 %v670, %v950
        %v964 = vmul.f32 %v671, %v950
        %v965 = vmul.f32 %v672, %v950
        %v966 = vmul.f32 %v673, %v950
        %v967 = vmul.f32 %v674, %v950
        %v968 = vmul.f32 %v675, %v950
        %v969 = vmul.f32 %v676, %v950
        %v970 = vmul.f32 %v677, %v950
        %v971 = vmul.f32 %v678, %v950
        %v972 = vmul.f32 %v679, %v950
        %v973 = vmul.f32 %v680, %v950
        %v974 = vmul.f32 %v681, %v950
        %v975 = vmul.f32 %v682, %v950
        %v976 = vmul.f32 %v683, %v950
        %v977 = vmul.f32 %v684, %v950
        %v978 = vmul.f32 %v685, %v950
        %v979 = vmul.f32 %v686, %v950
        %v980 = vmul.f32 %v687, %v950
        %v981 = vlaneseq
        %v982 = vshrl.u32 %v981, 7
        %v983 = vsub.s32 1, %v982
        %v984 = vrot.slane %v364, %v983
        %v985 = vmul.f32 %v332, %v984
        %v986 = vmul.f32 %v333, %v984
        %v987 = vmul.f32 %v334, %v984
        %v988 = vmul.f32 %v335, %v984
        %v989 = vmul.f32 %v336, %v984
        %v990 = vmul.f32 %v337, %v984
        %v991 = vmul.f32 %v338, %v984
        %v992 = vmul.f32 %v339, %v984
        %v993 = vmul.f32 %v340, %v984
        %v994 = vmul.f32 %v341, %v984
        %v995 = vmul.f32 %v342, %v984
        %v996 = vmul.f32 %v343, %v984
        %v997 = vmul.f32 %v344, %v984
        %v998 = vmul.f32 %v345, %v984
        %v999 = vmul.f32 %v346, %v984
        %v1000 = vmul.f32 %v347, %v984
        %v1001 = vmul.f32 %v348, %v984
        %v1002 = vmul.f32 %v349, %v984
        %v1003 = vmul.f32 %v350, %v984
        %v1004 = vmul.f32 %v351, %v984
        %v1005 = vmul.f32 %v352, %v984
        %v1006 = vmul.f32 %v353, %v984
        %v1007 = vmul.f32 %v354, %v984
        %v1008 = vmul.f32 %v355, %v984
        %v1009 = vmul.f32 %v356, %v984
        %v1010 = vmul.f32 %v357, %v984
        %v1011 = vmul.f32 %v358, %v984
        %v1012 = vmul.f32 %v359, %v984
        %v1013 = vmul.f32 %v360, %v984
        %v1014 = vmul.f32 %v361, %v984
        %v1015 = vadd.f32 %v951, %v985
        %v1016 = vadd.f32 %v952, %v986
        %v1017 = vadd.f32 %v953, %v987
        %v1018 = vadd.f32 %v954, %v988
        %v1019 = vadd.f32 %v955, %v989
        %v1020 = vadd.f32 %v956, %v990
        %v1021 = vadd.f32 %v957, %v991
        %v1022 = vadd.f32 %v958, %v992
        %v1023 = vadd.f32 %v959, %v993
        %v1024 = vadd.f32 %v960, %v994
        %v1025 = vadd.f32 %v961, %v995
        %v1026 = vadd.f32 %v962, %v996
        %v1027 = vadd.f32 %v963, %v997
        %v1028 = vadd.f32 %v964, %v998
        %v1029 = vadd.f32 %v965, %v999
        %v1030 = vadd.f32 %v966, %v1000
        %v1031 = vadd.f32 %v967, %v1001
        %v1032 = vadd.f32 %v968, %v1002
        %v1033 = vadd.f32 %v969, %v1003
        %v1034 = vadd.f32 %v970, %v1004
        %v1035 = vadd.f32 %v971, %v1005
        %v1036 = vadd.f32 %v972, %v1006
        %v1037 = vadd.f32 %v973, %v1007
        %v1038 = vadd.f32 %v974, %v1008
        %v1039 = vadd.f32 %v975, %v1009
        %v1040 = vadd.f32 %v976, %v1010
        %v1041 = vadd.f32 %v977, %v1011
        %v1042 = vadd.f32 %v978, %v1012
        %v1043 = vadd.f32 %v979, %v1013
        %v1044 = vadd.f32 %v980, %v1014
        %v1045 = vlaneseq
        %v1046 = vshrl.u32 %v1045, 7
        %v1047 = vsub.s32 2, %v1046
        %v1048 = vrot.slane %v364, %v1047
        %v1049 = vmul.f32 %v915, %v1048
        %v1050 = vmul.f32 %v916, %v1048
        %v1051 = vmul.f32 %v917, %v1048
        %v1052 = vmul.f32 %v918, %v1048
        %v1053 = vmul.f32 %v919, %v1048
        %v1054 = vmul.f32 %v920, %v1048
        %v1055 = vmul.f32 %v921, %v1048
        %v1056 = vmul.f32 %v922, %v1048
        %v1057 = vmul.f32 %v923, %v1048
        %v1058 = vmul.f32 %v924, %v1048
        %v1059 = vmul.f32 %v925, %v1048
        %v1060 = vmul.f32 %v926, %v1048
        %v1061 = vmul.f32 %v927, %v1048
        %v1062 = vmul.f32 %v928, %v1048
        %v1063 = vmul.f32 %v929, %v1048
        %v1064 = vmul.f32 %v930, %v1048
        %v1065 = vmul.f32 %v931, %v1048
        %v1066 = vmul.f32 %v932, %v1048
        %v1067 = vmul.f32 %v933, %v1048
        %v1068 = vmul.f32 %v934, %v1048
        %v1069 = vmul.f32 %v935, %v1048
        %v1070 = vmul.f32 %v936, %v1048
        %v1071 = vmul.f32 %v937, %v1048
        %v1072 = vmul.f32 %v938, %v1048
        %v1073 = vmul.f32 %v939, %v1048
        %v1074 = vmul.f32 %v940, %v1048
        %v1075 = vmul.f32 %v941, %v1048
        %v1076 = vmul.f32 %v942, %v1048
        %v1077 = vmul.f32 %v943, %v1048
        %v1078 = vmul.f32 %v944, %v1048
        %v1079 = vadd.f32 %v1015, %v1049
        %v1080 = vadd.f32 %v1016, %v1050
        %v1081 = vadd.f32 %v1017, %v1051
        %v1082 = vadd.f32 %v1018, %v1052
        %v1083 = vadd.f32 %v1019, %v1053
        %v1084 = vadd.f32 %v1020, %v1054
        %v1085 = vadd.f32 %v1021, %v1055
        %v1086 = vadd.f32 %v1022, %v1056
        %v1087 = vadd.f32 %v1023, %v1057
        %v1088 = vadd.f32 %v1024, %v1058
        %v1089 = vadd.f32 %v1025, %v1059
        %v1090 = vadd.f32 %v1026, %v1060
        %v1091 = vadd.f32 %v1027, %v1061
        %v1092 = vadd.f32 %v1028, %v1062
        %v1093 = vadd.f32 %v1029, %v1063
        %v1094 = vadd.f32 %v1030, %v1064
        %v1095 = vadd.f32 %v1031, %v1065
        %v1096 = vadd.f32 %v1032, %v1066
        %v1097 = vadd.f32 %v1033, %v1067
        %v1098 = vadd.f32 %v1034, %v1068
        %v1099 = vadd.f32 %v1035, %v1069
        %v1100 = vadd.f32 %v1036, %v1070
        %v1101 = vadd.f32 %v1037, %v1071
        %v1102 = vadd.f32 %v1038, %v1072
        %v1103 = vadd.f32 %v1039, %v1073
        %v1104 = vadd.f32 %v1040, %v1074
        %v1105 = vadd.f32 %v1041, %v1075
        %v1106 = vadd.f32 %v1042, %v1076
        %v1107 = vadd.f32 %v1043, %v1077
        %v1108 = vadd.f32 %v1044, %v1078
        %v1109 = vlaneseq
        %v1110 = vshrl.u32 %v1109, 7
        %v1111 = vsub.s32 3, %v1110
        %v1112 = vrot.slane %v364, %v1111
        %v1113 = vmul.f32 %v658, %v1112
        %v1114 = vmul.f32 %v659, %v1112
        %v1115 = vmul.f32 %v660, %v1112
        %v1116 = vmul.f32 %v661, %v1112
        %v1117 = vmul.f32 %v662, %v1112
        %v1118 = vmul.f32 %v663, %v1112
        %v1119 = vmul.f32 %v664, %v1112
        %v1120 = vmul.f32 %v665, %v1112
        %v1121 = vmul.f32 %v666, %v1112
        %v1122 = vmul.f32 %v667, %v1112
        %v1123 = vmul.f32 %v668, %v1112
        %v1124 = vmul.f32 %v669, %v1112
        %v1125 = vmul.f32 %v670, %v1112
        %v1126 = vmul.f32 %v671, %v1112
        %v1127 = vmul.f32 %v672, %v1112
        %v1128 = vmul.f32 %v673, %v1112
        %v1129 = vmul.f32 %v674, %v1112
        %v1130 = vmul.f32 %v675, %v1112
        %v1131 = vmul.f32 %v676, %v1112
        %v1132 = vmul.f32 %v677, %v1112
        %v1133 = vmul.f32 %v678, %v1112
        %v1134 = vmul.f32 %v679, %v1112
        %v1135 = vmul.f32 %v680, %v1112
        %v1136 = vmul.f32 %v681, %v1112
        %v1137 = vmul.f32 %v682, %v1112
        %v1138 = vmul.f32 %v683, %v1112
        %v1139 = vmul.f32 %v684, %v1112
        %v1140 = vmul.f32 %v685, %v1112
        %v1141 = vmul.f32 %v686, %v1112
        %v1142 = vmul.f32 %v687, %v1112
        %v1143 = vmul.f32 %v688, %v1112
        %v1144 = vmul.f32 %v689, %v1112
        %v1145 = vlaneseq
        %v1146 = vshrl.u32 %v1145, 7
        %v1147 = vsub.s32 4, %v1146
        %v1148 = vrot.slane %v364, %v1147
        %v1149 = vmul.f32 %v332, %v1148
        %v1150 = vmul.f32 %v333, %v1148
        %v1151 = vmul.f32 %v334, %v1148
        %v1152 = vmul.f32 %v335, %v1148
        %v1153 = vmul.f32 %v336, %v1148
        %v1154 = vmul.f32 %v337, %v1148
        %v1155 = vmul.f32 %v338, %v1148
        %v1156 = vmul.f32 %v339, %v1148
        %v1157 = vmul.f32 %v340, %v1148
        %v1158 = vmul.f32 %v341, %v1148
        %v1159 = vmul.f32 %v342, %v1148
        %v1160 = vmul.f32 %v343, %v1148
        %v1161 = vmul.f32 %v344, %v1148
        %v1162 = vmul.f32 %v345, %v1148
        %v1163 = vmul.f32 %v346, %v1148
        %v1164 = vmul.f32 %v347, %v1148
        %v1165 = vmul.f32 %v348, %v1148
        %v1166 = vmul.f32 %v349, %v1148
        %v1167 = vmul.f32 %v350, %v1148
        %v1168 = vmul.f32 %v351, %v1148
        %v1169 = vmul.f32 %v352, %v1148
        %v1170 = vmul.f32 %v353, %v1148
        %v1171 = vmul.f32 %v354, %v1148
        %v1172 = vmul.f32 %v355, %v1148
        %v1173 = vmul.f32 %v356, %v1148
        %v1174 = vmul.f32 %v357, %v1148
        %v1175 = vmul.f32 %v358, %v1148
        %v1176 = vmul.f32 %v359, %v1148
        %v1177 = vmul.f32 %v360, %v1148
        %v1178 = vmul.f32 %v361, %v1148
        %v1179 = vmul.f32 %v362, %v1148
        %v1180 = vmul.f32 %v363, %v1148
        %v1181 = vadd.f32 %v1113, %v1149
        %v1182 = vadd.f32 %v1114, %v1150
        %v1183 = vadd.f32 %v1115, %v1151
        %v1184 = vadd.f32 %v1116, %v1152
        %v1185 = vadd.f32 %v1117, %v1153
        %v1186 = vadd.f32 %v1118, %v1154
        %v1187 = vadd.f32 %v1119, %v1155
        %v1188 = vadd.f32 %v1120, %v1156
        %v1189 = vadd.f32 %v1121, %v1157
        %v1190 = vadd.f32 %v1122, %v1158
        %v1191 = vadd.f32 %v1123, %v1159
        %v1192 = vadd.f32 %v1124, %v1160
        %v1193 = vadd.f32 %v1125, %v1161
        %v1194 = vadd.f32 %v1126, %v1162
        %v1195 = vadd.f32 %v1127, %v1163
        %v1196 = vadd.f32 %v1128, %v1164
        %v1197 = vadd.f32 %v1129, %v1165
        %v1198 = vadd.f32 %v1130, %v1166
        %v1199 = vadd.f32 %v1131, %v1167
        %v1200 = vadd.f32 %v1132, %v1168
        %v1201 = vadd.f32 %v1133, %v1169
        %v1202 = vadd.f32 %v1134, %v1170
        %v1203 = vadd.f32 %v1135, %v1171
        %v1204 = vadd.f32 %v1136, %v1172
        %v1205 = vadd.f32 %v1137, %v1173
        %v1206 = vadd.f32 %v1138, %v1174
        %v1207 = vadd.f32 %v1139, %v1175
        %v1208 = vadd.f32 %v1140, %v1176
        %v1209 = vadd.f32 %v1141, %v1177
        %v1210 = vadd.f32 %v1142, %v1178
        %v1211 = vadd.f32 %v1143, %v1179
        %v1212 = vadd.f32 %v1144, %v1180
        %v1213 = vlaneseq
        %v1214 = vshrl.u32 %v1213, 7
        %v1215 = vsub.s32 5, %v1214
        %v1216 = vrot.slane %v364, %v1215
        %v1217 = vmul.f32 %v915, %v1216
        %v1218 = vmul.f32 %v916, %v1216
        %v1219 = vmul.f32 %v917, %v1216
        %v1220 = vmul.f32 %v918, %v1216
        %v1221 = vmul.f32 %v919, %v1216
        %v1222 = vmul.f32 %v920, %v1216
        %v1223 = vmul.f32 %v921, %v1216
        %v1224 = vmul.f32 %v922, %v1216
        %v1225 = vmul.f32 %v923, %v1216
        %v1226 = vmul.f32 %v924, %v1216
        %v1227 = vmul.f32 %v925, %v1216
        %v1228 = vmul.f32 %v926, %v1216
        %v1229 = vmul.f32 %v927, %v1216
        %v1230 = vmul.f32 %v928, %v1216
        %v1231 = vmul.f32 %v929, %v1216
        %v1232 = vmul.f32 %v930, %v1216
        %v1233 = vmul.f32 %v931, %v1216
        %v1234 = vmul.f32 %v932, %v1216
        %v1235 = vmul.f32 %v933, %v1216
        %v1236 = vmul.f32 %v934, %v1216
        %v1237 = vmul.f32 %v935, %v1216
        %v1238 = vmul.f32 %v936, %v1216
        %v1239 = vmul.f32 %v937, %v1216
        %v1240 = vmul.f32 %v938, %v1216
        %v1241 = vmul.f32 %v939, %v1216
        %v1242 = vmul.f32 %v940, %v1216
        %v1243 = vmul.f32 %v941, %v1216
        %v1244 = vmul.f32 %v942, %v1216
        %v1245 = vmul.f32 %v943, %v1216
        %v1246 = vmul.f32 %v944, %v1216
        %v1247 = vmul.f32 %v945, %v1216
        %v1248 = vmul.f32 %v946, %v1216
        %v1249 = vadd.f32 %v1181, %v1217
        %v1250 = vadd.f32 %v1182, %v1218
        %v1251 = vadd.f32 %v1183, %v1219
        %v1252 = vadd.f32 %v1184, %v1220
        %v1253 = vadd.f32 %v1185, %v1221
        %v1254 = vadd.f32 %v1186, %v1222
        %v1255 = vadd.f32 %v1187, %v1223
        %v1256 = vadd.f32 %v1188, %v1224
        %v1257 = vadd.f32 %v1189, %v1225
        %v1258 = vadd.f32 %v1190, %v1226
        %v1259 = vadd.f32 %v1191, %v1227
        %v1260 = vadd.f32 %v1192, %v1228
        %v1261 = vadd.f32 %v1193, %v1229
        %v1262 = vadd.f32 %v1194, %v1230
        %v1263 = vadd.f32 %v1195, %v1231
        %v1264 = vadd.f32 %v1196, %v1232
        %v1265 = vadd.f32 %v1197, %v1233
        %v1266 = vadd.f32 %v1198, %v1234
        %v1267 = vadd.f32 %v1199, %v1235
        %v1268 = vadd.f32 %v1200, %v1236
        %v1269 = vadd.f32 %v1201, %v1237
        %v1270 = vadd.f32 %v1202, %v1238
        %v1271 = vadd.f32 %v1203, %v1239
        %v1272 = vadd.f32 %v1204, %v1240
        %v1273 = vadd.f32 %v1205, %v1241
        %v1274 = vadd.f32 %v1206, %v1242
        %v1275 = vadd.f32 %v1207, %v1243
        %v1276 = vadd.f32 %v1208, %v1244
        %v1277 = vadd.f32 %v1209, %v1245
        %v1278 = vadd.f32 %v1210, %v1246
        %v1279 = vadd.f32 %v1211, %v1247
        %v1280 = vadd.f32 %v1212, %v1248
        %v1281 = vlaneseq
        %v1282 = vshrl.u32 %v1281, 7
        %v1283 = vsub.s32 6, %v1282
        %v1284 = vrot.slane %v364, %v1283
        %v1285 = vmul.f32 %v660, %v1284
        %v1286 = vmul.f32 %v661, %v1284
        %v1287 = vmul.f32 %v662, %v1284
        %v1288 = vmul.f32 %v663, %v1284
        %v1289 = vmul.f32 %v664, %v1284
        %v1290 = vmul.f32 %v665, %v1284
        %v1291 = vmul.f32 %v666, %v1284
        %v1292 = vmul.f32 %v667, %v1284
        %v1293 = vmul.f32 %v668, %v1284
        %v1294 = vmul.f32 %v669, %v1284
        %v1295 = vmul.f32 %v670, %v1284
        %v1296 = vmul.f32 %v671, %v1284
        %v1297 = vmul.f32 %v672, %v1284
        %v1298 = vmul.f32 %v673, %v1284
        %v1299 = vmul.f32 %v674, %v1284
        %v1300 = vmul.f32 %v675, %v1284
        %v1301 = vmul.f32 %v676, %v1284
        %v1302 = vmul.f32 %v677, %v1284
        %v1303 = vmul.f32 %v678, %v1284
        %v1304 = vmul.f32 %v679, %v1284
        %v1305 = vmul.f32 %v680, %v1284
        %v1306 = vmul.f32 %v681, %v1284
        %v1307 = vmul.f32 %v682, %v1284
        %v1308 = vmul.f32 %v683, %v1284
        %v1309 = vmul.f32 %v684, %v1284
        %v1310 = vmul.f32 %v685, %v1284
        %v1311 = vmul.f32 %v686, %v1284
        %v1312 = vmul.f32 %v687, %v1284
        %v1313 = vmul.f32 %v688, %v1284
        %v1314 = vmul.f32 %v689, %v1284
        %v1315 = vlaneseq
        %v1316 = vshrl.u32 %v1315, 7
        %v1317 = vsub.s32 7, %v1316
        %v1318 = vrot.slane %v364, %v1317
        %v1319 = vmul.f32 %v334, %v1318
        %v1320 = vmul.f32 %v335, %v1318
        %v1321 = vmul.f32 %v336, %v1318
        %v1322 = vmul.f32 %v337, %v1318
        %v1323 = vmul.f32 %v338, %v1318
        %v1324 = vmul.f32 %v339, %v1318
        %v1325 = vmul.f32 %v340, %v1318
        %v1326 = vmul.f32 %v341, %v1318
        %v1327 = vmul.f32 %v342, %v1318
        %v1328 = vmul.f32 %v343, %v1318
        %v1329 = vmul.f32 %v344, %v1318
        %v1330 = vmul.f32 %v345, %v1318
        %v1331 = vmul.f32 %v346, %v1318
        %v1332 = vmul.f32 %v347, %v1318
        %v1333 = vmul.f32 %v348, %v1318
        %v1334 = vmul.f32 %v349, %v1318
        %v1335 = vmul.f32 %v350, %v1318
        %v1336 = vmul.f32 %v351, %v1318
        %v1337 = vmul.f32 %v352, %v1318
        %v1338 = vmul.f32 %v353, %v1318
        %v1339 = vmul.f32 %v354, %v1318
        %v1340 = vmul.f32 %v355, %v1318
        %v1341 = vmul.f32 %v356, %v1318
        %v1342 = vmul.f32 %v357, %v1318
        %v1343 = vmul.f32 %v358, %v1318
        %v1344 = vmul.f32 %v359, %v1318
        %v1345 = vmul.f32 %v360, %v1318
        %v1346 = vmul.f32 %v361, %v1318
        %v1347 = vmul.f32 %v362, %v1318
        %v1348 = vmul.f32 %v363, %v1318
        %v1349 = vadd.f32 %v1285, %v1319
        %v1350 = vadd.f32 %v1286, %v1320
        %v1351 = vadd.f32 %v1287, %v1321
        %v1352 = vadd.f32 %v1288, %v1322
        %v1353 = vadd.f32 %v1289, %v1323
        %v1354 = vadd.f32 %v1290, %v1324
        %v1355 = vadd.f32 %v1291, %v1325
        %v1356 = vadd.f32 %v1292, %v1326
        %v1357 = vadd.f32 %v1293, %v1327
        %v1358 = vadd.f32 %v1294, %v1328
        %v1359 = vadd.f32 %v1295, %v1329
        %v1360 = vadd.f32 %v1296, %v1330
        %v1361 = vadd.f32 %v1297, %v1331
        %v1362 = vadd.f32 %v1298, %v1332
        %v1363 = vadd.f32 %v1299, %v1333
        %v1364 = vadd.f32 %v1300, %v1334
        %v1365 = vadd.f32 %v1301, %v1335
        %v1366 = vadd.f32 %v1302, %v1336
        %v1367 = vadd.f32 %v1303, %v1337
        %v1368 = vadd.f32 %v1304, %v1338
        %v1369 = vadd.f32 %v1305, %v1339
        %v1370 = vadd.f32 %v1306, %v1340
        %v1371 = vadd.f32 %v1307, %v1341
        %v1372 = vadd.f32 %v1308, %v1342
        %v1373 = vadd.f32 %v1309, %v1343
        %v1374 = vadd.f32 %v1310, %v1344
        %v1375 = vadd.f32 %v1311, %v1345
        %v1376 = vadd.f32 %v1312, %v1346
        %v1377 = vadd.f32 %v1313, %v1347
        %v1378 = vadd.f32 %v1314, %v1348
        %v1379 = vlaneseq
        %v1380 = vshrl.u32 %v1379, 7
        %v1381 = vsub.s32 0, %v1380
        %v1382 = vrot.slane %v365, %v1381
        %v1383 = vmul.f32 %v917, %v1382
        %v1384 = vmul.f32 %v918, %v1382
        %v1385 = vmul.f32 %v919, %v1382
        %v1386 = vmul.f32 %v920, %v1382
        %v1387 = vmul.f32 %v921, %v1382
        %v1388 = vmul.f32 %v922, %v1382
        %v1389 = vmul.f32 %v923, %v1382
        %v1390 = vmul.f32 %v924, %v1382
        %v1391 = vmul.f32 %v925, %v1382
        %v1392 = vmul.f32 %v926, %v1382
        %v1393 = vmul.f32 %v927, %v1382
        %v1394 = vmul.f32 %v928, %v1382
        %v1395 = vmul.f32 %v929, %v1382
        %v1396 = vmul.f32 %v930, %v1382
        %v1397 = vmul.f32 %v931, %v1382
        %v1398 = vmul.f32 %v932, %v1382
        %v1399 = vmul.f32 %v933, %v1382
        %v1400 = vmul.f32 %v934, %v1382
        %v1401 = vmul.f32 %v935, %v1382
        %v1402 = vmul.f32 %v936, %v1382
        %v1403 = vmul.f32 %v937, %v1382
        %v1404 = vmul.f32 %v938, %v1382
        %v1405 = vmul.f32 %v939, %v1382
        %v1406 = vmul.f32 %v940, %v1382
        %v1407 = vmul.f32 %v941, %v1382
        %v1408 = vmul.f32 %v942, %v1382
        %v1409 = vmul.f32 %v943, %v1382
        %v1410 = vmul.f32 %v944, %v1382
        %v1411 = vmul.f32 %v945, %v1382
        %v1412 = vmul.f32 %v946, %v1382
        %v1413 = vadd.f32 %v1349, %v1383
        %v1414 = vadd.f32 %v1350, %v1384
        %v1415 = vadd.f32 %v1351, %v1385
        %v1416 = vadd.f32 %v1352, %v1386
        %v1417 = vadd.f32 %v1353, %v1387
        %v1418 = vadd.f32 %v1354, %v1388
        %v1419 = vadd.f32 %v1355, %v1389
        %v1420 = vadd.f32 %v1356, %v1390
        %v1421 = vadd.f32 %v1357, %v1391
        %v1422 = vadd.f32 %v1358, %v1392
        %v1423 = vadd.f32 %v1359, %v1393
        %v1424 = vadd.f32 %v1360, %v1394
        %v1425 = vadd.f32 %v1361, %v1395
        %v1426 = vadd.f32 %v1362, %v1396
        %v1427 = vadd.f32 %v1363, %v1397
        %v1428 = vadd.f32 %v1364, %v1398
        %v1429 = vadd.f32 %v1365, %v1399
        %v1430 = vadd.f32 %v1366, %v1400
        %v1431 = vadd.f32 %v1367, %v1401
        %v1432 = vadd.f32 %v1368, %v1402
        %v1433 = vadd.f32 %v1369, %v1403
        %v1434 = vadd.f32 %v1370, %v1404
        %v1435 = vadd.f32 %v1371, %v1405
        %v1436 = vadd.f32 %v1372, %v1406
        %v1437 = vadd.f32 %v1373, %v1407
        %v1438 = vadd.f32 %v1374, %v1408
        %v1439 = vadd.f32 %v1375, %v1409
        %v1440 = vadd.f32 %v1376, %v1410
        %v1441 = vadd.f32 %v1377, %v1411
        %v1442 = vadd.f32 %v1378, %v1412
        %v1443 = vadd.f32 %v1249, 0.0
        %v1444 = vadd.f32 %v1250, 0.0
        %v1445 = vadd.f32 %v1251, %v1079
        %v1446 = vadd.f32 %v1252, %v1080
        %v1447 = vadd.f32 %v1253, %v1081
        %v1448 = vadd.f32 %v1254, %v1082
        %v1449 = vadd.f32 %v1255, %v1083
        %v1450 = vadd.f32 %v1256, %v1084
        %v1451 = vadd.f32 %v1257, %v1085
        %v1452 = vadd.f32 %v1258, %v1086
        %v1453 = vadd.f32 %v1259, %v1087
        %v1454 = vadd.f32 %v1260, %v1088
        %v1455 = vadd.f32 %v1261, %v1089
        %v1456 = vadd.f32 %v1262, %v1090
        %v1457 = vadd.f32 %v1263, %v1091
        %v1458 = vadd.f32 %v1264, %v1092
        %v1459 = vadd.f32 %v1265, %v1093
        %v1460 = vadd.f32 %v1266, %v1094
        %v1461 = vadd.f32 %v1267, %v1095
        %v1462 = vadd.f32 %v1268, %v1096
        %v1463 = vadd.f32 %v1269, %v1097
        %v1464 = vadd.f32 %v1270, %v1098
        %v1465 = vadd.f32 %v1271, %v1099
        %v1466 = vadd.f32 %v1272, %v1100
        %v1467 = vadd.f32 %v1273, %v1101
        %v1468 = vadd.f32 %v1274, %v1102
        %v1469 = vadd.f32 %v1275, %v1103
        %v1470 = vadd.f32 %v1276, %v1104
        %v1471 = vadd.f32 %v1277, %v1105
        %v1472 = vadd.f32 %v1278, %v1106
        %v1473 = vadd.f32 %v1279, %v1107
        %v1474 = vadd.f32 %v1280, %v1108
        %v1475 = vadd.f32 %v1443, %v1413
        %v1476 = vadd.f32 %v1444, %v1414
        %v1477 = vadd.f32 %v1445, %v1415
        %v1478 = vadd.f32 %v1446, %v1416
        %v1479 = vadd.f32 %v1447, %v1417
        %v1480 = vadd.f32 %v1448, %v1418
        %v1481 = vadd.f32 %v1449, %v1419
        %v1482 = vadd.f32 %v1450, %v1420
        %v1483 = vadd.f32 %v1451, %v1421
        %v1484 = vadd.f32 %v1452, %v1422
        %v1485 = vadd.f32 %v1453, %v1423
        %v1486 = vadd.f32 %v1454, %v1424
        %v1487 = vadd.f32 %v1455, %v1425
        %v1488 = vadd.f32 %v1456, %v1426
        %v1489 = vadd.f32 %v1457, %v1427
        %v1490 = vadd.f32 %v1458, %v1428
        %v1491 = vadd.f32 %v1459, %v1429
        %v1492 = vadd.f32 %v1460, %v1430
        %v1493 = vadd.f32 %v1461, %v1431
        %v1494 = vadd.f32 %v1462, %v1432
        %v1495 = vadd.f32 %v1463, %v1433
        %v1496 = vadd.f32 %v1464, %v1434
        %v1497 = vadd.f32 %v1465, %v1435
        %v1498 = vadd.f32 %v1466, %v1436
        %v1499 = vadd.f32 %v1467, %v1437
        %v1500 = vadd.f32 %v1468, %v1438
        %v1501 = vadd.f32 %v1469, %v1439
        %v1502 = vadd.f32 %v1470, %v1440
        %v1503 = vadd.f32 %v1471, %v1441
        %v1504 = vadd.f32 %v1472, %v1442
        %v1505 = vadd.f32 %v1473, 0.0
        %v1506 = vadd.f32 %v1474, 0.0
        %v1508 = vlaneseq
        %v1509 = vshrl.u32 %v1508, 7
        %v1510 = vsub.s32 0, %v1509
        %v1511 = vrot.slane %v366, %v1510
        %v1513 = vadd.f32 %v1475, %v1511
        %v1514 = vadd.f32 %v1476, %v1511
        %v1515 = vadd.f32 %v1477, %v1511
        %v1516 = vadd.f32 %v1478, %v1511
        %v1517 = vadd.f32 %v1479, %v1511
        %v1518 = vadd.f32 %v1480, %v1511
        %v1519 = vadd.f32 %v1481, %v1511
        %v1520 = vadd.f32 %v1482, %v1511
        %v1521 = vadd.f32 %v1483, %v1511
        %v1522 = vadd.f32 %v1484, %v1511
        %v1523 = vadd.f32 %v1485, %v1511
        %v1524 = vadd.f32 %v1486, %v1511
        %v1525 = vadd.f32 %v1487, %v1511
        %v1526 = vadd.f32 %v1488, %v1511
        %v1527 = vadd.f32 %v1489, %v1511
        %v1528 = vadd.f32 %v1490, %v1511
        %v1529 = vadd.f32 %v1491, %v1511
        %v1530 = vadd.f32 %v1492, %v1511
        %v1531 = vadd.f32 %v1493, %v1511
        %v1532 = vadd.f32 %v1494, %v1511
        %v1533 = vadd.f32 %v1495, %v1511
        %v1534 = vadd.f32 %v1496, %v1511
        %v1535 = vadd.f32 %v1497, %v1511
        %v1536 = vadd.f32 %v1498, %v1511
        %v1537 = vadd.f32 %v1499, %v1511
        %v1538 = vadd.f32 %v1500, %v1511
        %v1539 = vadd.f32 %v1501, %v1511
        %v1540 = vadd.f32 %v1502, %v1511
        %v1541 = vadd.f32 %v1503, %v1511
        %v1542 = vadd.f32 %v1504, %v1511
        %v1543 = vadd.f32 %v1505, %v1511
        %v1544 = vadd.f32 %v1506, %v1511
        %1545 = vst [vmem:[%s328] sm:$0xff] %v1513
        %1546 = vst [vmem:[%s328 + $0x8] sm:$0xff] %v1514
        %1547 = vst [vmem:[%s328 + $0x10] sm:$0xff] %v1515
        %1548 = vst [vmem:[%s328 + $0x18] sm:$0xff] %v1516
        %1549 = vst [vmem:[%s328 + $0x20] sm:$0xff] %v1517
        %1550 = vst [vmem:[%s328 + $0x28] sm:$0xff] %v1518
        %1551 = vst [vmem:[%s328 + $0x30] sm:$0xff] %v1519
        %1552 = vst [vmem:[%s328 + $0x38] sm:$0xff] %v1520
        %1553 = vst [vmem:[%s328 + $0x40] sm:$0xff] %v1521
        %1554 = vst [vmem:[%s328 + $0x48] sm:$0xff] %v1522
        %1555 = vst [vmem:[%s328 + $0x50] sm:$0xff] %v1523
        %1556 = vst [vmem:[%s328 + $0x58] sm:$0xff] %v1524
        %1557 = vst [vmem:[%s328 + $0x60] sm:$0xff] %v1525
        %1558 = vst [vmem:[%s328 + $0x68] sm:$0xff] %v1526
        %1559 = vst [vmem:[%s328 + $0x70] sm:$0xff] %v1527
        %1560 = vst [vmem:[%s328 + $0x78] sm:$0xff] %v1528
        %1561 = vst [vmem:[%s328 + $0x80] sm:$0xff] %v1529
        %1562 = vst [vmem:[%s328 + $0x88] sm:$0xff] %v1530
        %1563 = vst [vmem:[%s328 + $0x90] sm:$0xff] %v1531
        %1564 = vst [vmem:[%s328 + $0x98] sm:$0xff] %v1532
        %1565 = vst [vmem:[%s328 + $0xa0] sm:$0xff] %v1533
        %1566 = vst [vmem:[%s328 + $0xa8] sm:$0xff] %v1534
        %1567 = vst [vmem:[%s328 + $0xb0] sm:$0xff] %v1535
        %1568 = vst [vmem:[%s328 + $0xb8] sm:$0xff] %v1536
        %1569 = vst [vmem:[%s328 + $0xc0] sm:$0xff] %v1537
        %1570 = vst [vmem:[%s328 + $0xc8] sm:$0xff] %v1538
        %1571 = vst [vmem:[%s328 + $0xd0] sm:$0xff] %v1539
        %1572 = vst [vmem:[%s328 + $0xd8] sm:$0xff] %v1540
        %1573 = vst [vmem:[%s328 + $0xe0] sm:$0xff] %v1541
        %1574 = vst [vmem:[%s328 + $0xe8] sm:$0xff] %v1542
        %1575 = vst [vmem:[%s328 + $0xf0] sm:$0xff] %v1543
        %1576 = vst [vmem:[%s328 + $0xf8] sm:$0xff] %v1544
        %s1577 = sand.u32 %s166, 1
        %s1578 = scalar_lea.sflag [#allocation4], %s1577
        %s1579 = sand.u32 %s166, 1
        %s1580 = smul.addr %s1579, 256
        %s1581 = scalar_lea.vmem [#allocation6], %s1580
        // Predicated region
        $region83: #{tpu_custom_call.1} parent=73 // pred_check
          %p1582 = pneg %p176
        $region84: #{tpu_custom_call.1} parent=73 // pred_check_branch
          %1584 = sbr.rel (%p1582) target = $region86
        $region85: #{tpu_custom_call.1} parent=73 // pred_region
          %s1586 = ssub.s32 4096, 4096
          %1587 = vsyncadd %s1578, %s1586
          %s1588 = smul.addr %s26, 64
          %s1589 = sadd.s32 %s27, %s1588
          %s1590 = smul.addr %s1589, 128
          %s1591 = scalar_lea.hbm %s5, %s1590
          %s1592 = sshll.u32 %s1581, 4
          %s1593 = int_to_ptr.vmem [resolvable:$true] %s1592
          %1598 = dma.vmem_to_hbm [thread:$0]  %s1593, 4096, %s1591, %s1578, 128, 256, 8
        $region86: #{tpu_custom_call.1} parent=73 // pred_fallthru
          _
      $region74: #{tpu_custom_call.1} parent=5 // pred_fallthru
        _
      %p1599 = scmp.le.s32.totalorder 2, %s17
      // Predicated region
      $region87: #{tpu_custom_call.1} parent=5 // pred_check
        %p1600 = pneg %p1599
      $region88: #{tpu_custom_call.1} parent=5 // pred_check_branch
        %1602 = sbr.rel (%p1600) target = $region90
      $region89: #{tpu_custom_call.1} parent=5 // pred_region
        %s1603 = ssub.s32 %s17, 2
        // Predicated region
        $region91: #{tpu_custom_call.1} parent=89 // pred_check
          %p1604 = pneg %p182
        $region92: #{tpu_custom_call.1} parent=89 // pred_check_branch
          %1606 = sbr.rel (%p1604) target = $region94
        $region93: #{tpu_custom_call.1} parent=89 // pred_region
          %s1607 = sand.u32 %s167, 1
          %s1608 = scalar_lea.sflag [#allocation4], %s1607
          %s1609 = sand.u32 %s167, 1
          %s1610 = smul.addr %s1609, 256
          %s1611 = scalar_lea.vmem [#allocation6], %s1610
          %1612 = dma.done %s1608, 4096
        $region94: #{tpu_custom_call.1} parent=89 // pred_fallthru
          _
      $region90: #{tpu_custom_call.1} parent=5 // pred_fallthru
        _
    $region6: #{tpu_custom_call.1} parent=1 // loop_footer
      %s21 = sadd.s32 1, %s17
    $region7: #{tpu_custom_call.1} parent=1 // loop_footer_branch
      %16 = sbr.rel target = $region3
    $region8: #{tpu_custom_call.1} parent=1 // loop_exit
      _
    %1613 = vsyncpa [#allocation3], 1
    %s1614 = scalar_lea.sflag [#allocation3], 1
    %1615 = vsyncpa %s1614, 1
    %1616 = vsyncpa [#allocation4], 1
    %s1617 = scalar_lea.sflag [#allocation4], 1
    %1618 = vsyncpa %s1617, 1

</llo_original>
